<compile_context>
chip_gen: v5e
topology: v5e:2x2
jax: 0.10.0
libtpu: 0.0.40
codegen_flags: <defaults>
</compile_context>

<pallas_src>
import functools

import numpy as np
import jax
import jax.numpy as jnp
from jax import lax
from jax.experimental import pallas as pl
from jax.experimental.pallas import tpu as pltpu


# -----------------------------------------------------------------------------
# Sinusoid table (exact port of the reference numpy code)
# -----------------------------------------------------------------------------
def get_sinusoid_encoding_table(n_position, d_hid, padding_idx=None):
    def cal_angle(position, hid_idx):
        return position / np.power(10000, 2 * (hid_idx // 2) / d_hid)

    def get_posi_angle_vec(position):
        return [cal_angle(position, hid_j) for hid_j in range(d_hid)]

    sinusoid_table = np.array(
        [get_posi_angle_vec(pos_i) for pos_i in range(n_position)]
    )
    sinusoid_table[:, 0::2] = np.sin(sinusoid_table[:, 0::2])
    sinusoid_table[:, 1::2] = np.cos(sinusoid_table[:, 1::2])
    if padding_idx is not None:
        sinusoid_table[padding_idx] = 0.0
    return jnp.asarray(sinusoid_table, dtype=jnp.float32)


# -----------------------------------------------------------------------------
# In-kernel helpers
# -----------------------------------------------------------------------------
def _layer_norm(x, g, b, eps=1e-5):
    mu = jnp.mean(x, axis=-1, keepdims=True)
    var = jnp.mean((x - mu) ** 2, axis=-1, keepdims=True)
    return (x - mu) * lax.rsqrt(var + eps) * g + b


def _conv1d_same(inp_bf, w_ref, bias, buf_ref, *, T):
    """'same' Conv1d on (T, D_in) as K shifted bf16 matmuls.

    w_ref: (1, K, D_in, D_out) bf16 (current layer's weights).
    buf_ref: (T + K - 1, D_in) bf16 VMEM scratch; the input is written at row
    offset pad with a zero halo, and each tap is a statically shifted load —
    no rolls and no per-tap edge masks.
    Matches PyTorch Conv1d(padding=(K-1)//2) exactly for odd K (K=1 also exact).
    """
    K = w_ref.shape[1]
    d_out = w_ref.shape[3]
    if K == 1:
        return jnp.dot(inp_bf, w_ref[0, 0],
                       preferred_element_type=jnp.float32) + bias

    pad = (K - 1) // 2
    d_in = inp_bf.shape[1]
    buf_ref[pl.ds(0, pad), :] = jnp.zeros((pad, d_in), jnp.bfloat16)
    buf_ref[pl.ds(pad, T), :] = inp_bf
    buf_ref[pl.ds(pad + T, K - 1 - pad), :] = jnp.zeros((K - 1 - pad, d_in),
                                                        jnp.bfloat16)
    acc = jnp.zeros((T, d_out), jnp.float32)
    for kk in range(K):                      # static tap loop
        acc = acc + jnp.dot(buf_ref[pl.ds(kk, T), :], w_ref[0, kk],
                            preferred_element_type=jnp.float32)
    return acc + bias


# -----------------------------------------------------------------------------
# Fused FFT-block kernel: one (batch element, layer) per grid step.
# The residual stream is carried in the resident output block across the
# (sequential) layer axis.
# -----------------------------------------------------------------------------
def _decoder_kernel(lengths_ref, x_ref,
                    wqkv_ref, bqkv_ref, wo_ref, bo_ref,
                    ln1_g_ref, ln1_b_ref,
                    w1_ref, b1_ref, w2_ref, b2_ref,
                    ln2_g_ref, ln2_b_ref,
                    o_ref, head_cat_ref, cbuf1_ref, cbuf2_ref,
                    *, n_head, d_k):
    T = x_ref.shape[1]
    H = n_head
    b = pl.program_id(0)
    l = pl.program_id(1)
    length = lengths_ref[b]                   # scalar (SMEM, prefetched)

    # Masks rebuilt in-kernel from the scalar length (suffix-padding mask).
    row = lax.broadcasted_iota(jnp.int32, (T, 1), 0)
    col = lax.broadcasted_iota(jnp.int32, (1, T), 1)
    keep = (row < length).astype(jnp.float32)          # (T, 1), 1.0 = valid
    key_bias = jnp.where(col < length, 0.0, -1e9)      # (1, T) additive key mask

    # Layer 0: seed the resident output block with the (pos-encoded) input.
    @pl.when(l == 0)
    def _():
        o_ref[0] = x_ref[0]

    x = o_ref[0]                               # (T, D) f32 residual stream

    # ---------------- multi-head self-attention (fused QKV) ----------------
    # 1/sqrt(d_k) temperature is folded into the Q columns of wqkv on the host.
    x_bf = x.astype(jnp.bfloat16)
    qkv = jnp.dot(x_bf, wqkv_ref[0],
                  preferred_element_type=jnp.float32) + bqkv_ref[0]
    qkv_bf = qkv.astype(jnp.bfloat16)          # single bf16 cast for all heads

    for h in range(H):                          # static head loop
        q_h = qkv_bf[:, h * d_k:(h + 1) * d_k]
        k_h = qkv_bf[:, (H + h) * d_k:(H + h + 1) * d_k]
        v_h = qkv_bf[:, (2 * H + h) * d_k:(2 * H + h + 1) * d_k]

        # q @ k^T without an explicit transpose: contract dim 1 of both.
        scores = lax.dot_general(
            q_h, k_h, dimension_numbers=(((1,), (1,)), ((), ())),
            preferred_element_type=jnp.float32)
        scores = scores + key_bias                       # mask padded keys
        scores = scores - jnp.max(scores, axis=-1, keepdims=True)
        p = jnp.exp(scores)                              # unnormalized probs
        denom = jnp.sum(p, axis=-1, keepdims=True)
        head_out = jnp.dot(p.astype(jnp.bfloat16), v_h,
                           preferred_element_type=jnp.float32)
        # normalize AFTER PV: (T, d_k) multiply instead of (T, T)
        head_out = head_out * pl.reciprocal(denom, approx=True)
        head_cat_ref[:, h * d_k:(h + 1) * d_k] = head_out.astype(jnp.bfloat16)

    # Single full-width W_o matmul over the concatenated heads.
    attn_out = jnp.dot(head_cat_ref[...], wo_ref[0],
                       preferred_element_type=jnp.float32) + bo_ref[0]

    h1 = _layer_norm(attn_out + x, ln1_g_ref[0], ln1_b_ref[0])
    h1 = h1 * keep                                       # masked_fill(mask, 0)

    # ---------------- position-wise conv feed-forward ----------------
    y = jnp.maximum(
        _conv1d_same(h1.astype(jnp.bfloat16), w1_ref, b1_ref[0], cbuf1_ref, T=T),
        0.0)
    y = _conv1d_same(y.astype(jnp.bfloat16), w2_ref, b2_ref[0], cbuf2_ref, T=T)
    h2 = _layer_norm(y + h1, ln2_g_ref[0], ln2_b_ref[0])
    o_ref[0] = h2 * keep                                 # masked_fill(mask, 0)


_WEIGHT_ORDER = ("wqkv", "bqkv", "wo", "bo", "ln1_g", "ln1_b",
                 "w1", "b1", "w2", "b2", "ln2_g", "ln2_b")


def decoder_forward(x, lengths, params, *, n_layers, n_head, d_k):
    B, T, D = x.shape
    weights = [params[name] for name in _WEIGHT_ORDER]
    di = params["w1"].shape[-1]
    k1 = params["w1"].shape[1]
    k2 = params["w2"].shape[1]

    kern = functools.partial(_decoder_kernel, n_head=n_head, d_k=d_k)

    def layer_spec(shape):
        # Block = one layer's worth of the stacked weight; index by layer only.
        nd = len(shape)
        return pl.BlockSpec((1,) + tuple(shape[1:]),
                            lambda b, l, lens, _nd=nd: (l,) + (0,) * (_nd - 1))

    def conv_buf_shape(k, d):
        return (T + k - 1, d) if k > 1 else (8, 128)     # dummy when no halo

    in_specs = ([pl.BlockSpec((1, T, D), lambda b, l, lens: (b, 0, 0))]
                + [layer_spec(w.shape) for w in weights])

    return pl.pallas_call(
        kern,
        out_shape=jax.ShapeDtypeStruct((B, T, D), jnp.float32),
        grid_spec=pltpu.PrefetchScalarGridSpec(
            num_scalar_prefetch=1,                 # per-batch lengths in SMEM
            grid=(B, n_layers),                    # layer axis sequential
            in_specs=in_specs,
            out_specs=pl.BlockSpec((1, T, D), lambda b, l, lens: (b, 0, 0)),
            scratch_shapes=[
                pltpu.VMEM((T, n_head * d_k), jnp.bfloat16),   # concat'd heads
                pltpu.VMEM(conv_buf_shape(k1, D), jnp.bfloat16),   # conv1 halo
                pltpu.VMEM(conv_buf_shape(k2, di), jnp.bfloat16),  # conv2 halo
            ],
        ),
        compiler_params=pltpu.CompilerParams(
            dimension_semantics=("parallel", "arbitrary"),
            # Safe on v7x (64 MiB physical); can be raised on v5e/v6e for large T.
            vmem_limit_bytes=48 * 1024 * 1024,
        ),
    )(lengths, x, *weights)


# -----------------------------------------------------------------------------
# Decoder wrapper (parameter setup + glue in plain JAX, hot path in Pallas)
# -----------------------------------------------------------------------------
class DecoderPallas:
    def __init__(self, config, key):
        tcfg = config["transformer"]
        self.max_seq_len = config["max_seq_len"]
        self.d_model = tcfg["decoder_hidden"]
        self.n_layers = tcfg["decoder_layer"]
        self.n_head = tcfg["decoder_head"]
        self.d_k = self.d_model // self.n_head
        self.d_inner = tcfg["conv_filter_size"]
        self.kernel_size = tcfg["conv_kernel_size"]
        self.use_stylefft = tcfg["style_FFT"]
        # TODO(synk): style_FFT=True / face_id=True path (FFTBlock_style) is not
        #             defined in the reference source and is not implemented.

        # position_enc: (1, max_seq_len + 1, d_model), frozen
        self.position_enc = get_sinusoid_encoding_table(
            self.max_seq_len + 1, self.d_model)[None]

        D, H, dk, di = self.d_model, self.n_head, self.d_k, self.d_inner
        k1, k2 = self.kernel_size
        L = self.n_layers

        def init(k, shape):
            return 0.05 * jax.random.normal(k, shape, jnp.float32)

        ks = jax.random.split(key, 4 * L)

        wqkv = jnp.stack([init(ks[4 * li + 0], (D, 3 * H * dk))
                          for li in range(L)])
        # Fold the 1/sqrt(d_k) attention temperature into the Q projection
        # (done once on the host; removes a T*T multiply per head per layer).
        q_scale = jnp.concatenate([
            jnp.full((H * dk,), 1.0 / np.sqrt(dk), jnp.float32),
            jnp.ones((2 * H * dk,), jnp.float32)])
        wqkv = wqkv * q_scale[None, None, :]

        # Per-layer weights stacked along a leading layer axis; matmul weights
        # stored in bf16 (f32 accumulation in-kernel), LN/bias params in f32.
        self.params = {
            "wqkv": wqkv.astype(jnp.bfloat16),
            # Q bias would also need the q_scale fold; biases are zero here.
            "bqkv": jnp.zeros((L, 1, 3 * H * dk), jnp.float32),
            "wo": jnp.stack([init(ks[4 * li + 1], (H * dk, D))
                             for li in range(L)]).astype(jnp.bfloat16),
            "bo": jnp.zeros((L, 1, D), jnp.float32),
            "ln1_g": jnp.ones((L, 1, D), jnp.float32),
            "ln1_b": jnp.zeros((L, 1, D), jnp.float32),
            "w1": jnp.stack([init(ks[4 * li + 2], (k1, D, di))
                             for li in range(L)]).astype(jnp.bfloat16),
            "b1": jnp.zeros((L, 1, di), jnp.float32),
            "w2": jnp.stack([init(ks[4 * li + 3], (k2, di, D))
                             for li in range(L)]).astype(jnp.bfloat16),
            "b2": jnp.zeros((L, 1, D), jnp.float32),
            "ln2_g": jnp.ones((L, 1, D), jnp.float32),
            "ln2_b": jnp.zeros((L, 1, D), jnp.float32),
        }

    def __call__(self, enc_seq, mask, style_vector=None, face_vector=None):
        # style_vector / face_vector are unused on the style_FFT=False path.
        B, seq_len, _ = enc_seq.shape

        if seq_len > self.max_seq_len:
            # eval-mode long-sequence branch: recompute the table at seq_len
            pe = get_sinusoid_encoding_table(seq_len, self.d_model)[None]
            dec_output = enc_seq + pe
        else:
            max_len = min(seq_len, self.max_seq_len)
            dec_output = enc_seq[:, :max_len, :] + self.position_enc[:, :max_len, :]
            mask = mask[:, :max_len]

        # Only O(B) scalars cross the kernel boundary: per-batch valid lengths,
        # assuming a standard suffix-padding mask (as produced by
        # get_mask_from_lengths in the reference pipeline).
        lengths = jnp.sum(jnp.logical_not(mask), axis=1).astype(jnp.int32)

        dec_output = decoder_forward(
            dec_output.astype(jnp.float32), lengths, self.params,
            n_layers=self.n_layers, n_head=self.n_head, d_k=self.d_k)
        return dec_output, mask


# -----------------------------------------------------------------------------
# Example run
# -----------------------------------------------------------------------------
if __name__ == "__main__":
    config = {
        "max_seq_len": 32,
        "transformer": {
            "decoder_hidden": 32,
            "decoder_layer": 2,
            "decoder_head": 2,
            "conv_filter_size": 64,
            "conv_kernel_size": [9, 1],
            "decoder_dropout": 0.0,
            "style_dim": 16,
            "style_FFT": False,
            "face_id": False,
        },
    }

    key = jax.random.PRNGKey(0)
    kp, kx = jax.random.split(key)
    dec = DecoderPallas(config, kp)

    B = 2
    T = config["max_seq_len"]
    D = config["transformer"]["decoder_hidden"]

    enc_seq = jax.random.normal(kx, (B, T, D), dtype=jnp.float32)
    lengths = jnp.array([T, T - 8])
    mask = jnp.arange(T)[None, :] >= lengths[:, None]   # True = padding
    style_vector = jnp.zeros((B, config["transformer"]["style_dim"]), jnp.float32)
    face_vector = jnp.zeros((B, config["transformer"]["style_dim"]), jnp.float32)

    dec_output, out_mask = dec(enc_seq, mask, style_vector, face_vector)
    jax.block_until_ready(dec_output)

    assert dec_output.shape == (B, T, D)
    assert out_mask.shape == (B, T)
    assert bool(jnp.all(jnp.isfinite(dec_output)))
    print("KERNEL_OK")
</pallas_src>

<mosaic_0001>
module attributes {stable_mosaic.version = 11 : i64} {
  func.func @_decoder_kernel(%arg0: i32, %arg1: i32, %arg2: memref<2xi32, #tpu.memory_space<smem>>, %arg3: memref<1x32x32xf32, #tpu.memory_space<vmem>>, %arg4: memref<1x32x96xbf16, #tpu.memory_space<vmem>>, %arg5: memref<1x1x96xf32, #tpu.memory_space<vmem>>, %arg6: memref<1x32x32xbf16, #tpu.memory_space<vmem>>, %arg7: memref<1x1x32xf32, #tpu.memory_space<vmem>>, %arg8: memref<1x1x32xf32, #tpu.memory_space<vmem>>, %arg9: memref<1x1x32xf32, #tpu.memory_space<vmem>>, %arg10: memref<1x9x32x64xbf16, #tpu.memory_space<vmem>>, %arg11: memref<1x1x64xf32, #tpu.memory_space<vmem>>, %arg12: memref<1x1x64x32xbf16, #tpu.memory_space<vmem>>, %arg13: memref<1x1x32xf32, #tpu.memory_space<vmem>>, %arg14: memref<1x1x32xf32, #tpu.memory_space<vmem>>, %arg15: memref<1x1x32xf32, #tpu.memory_space<vmem>>, %arg16: memref<1x32x32xf32, #tpu.memory_space<vmem>>, %arg17: memref<32x32xbf16, #tpu.memory_space<vmem>>, %arg18: memref<40x32xbf16, #tpu.memory_space<vmem>>, %arg19: memref<8x128xbf16, #tpu.memory_space<vmem>>) attributes {dimension_semantics = [#tpu.dimension_semantics<parallel>, #tpu.dimension_semantics<arbitrary>], iteration_bounds = array<i64: 2, 2>, scalar_prefetch = 1 : i64, scratch_operands = 3 : i64, tpu.core_type = #tpu.core_type<tc>, window_params = [{transform_indices = @transform_0, window_bounds = array<i64: 1, 32, 32>}, {transform_indices = @transform_1, window_bounds = array<i64: 1, 32, 96>}, {transform_indices = @transform_2, window_bounds = array<i64: 1, 1, 96>}, {transform_indices = @transform_3, window_bounds = array<i64: 1, 32, 32>}, {transform_indices = @transform_4, window_bounds = array<i64: 1, 1, 32>}, {transform_indices = @transform_5, window_bounds = array<i64: 1, 1, 32>}, {transform_indices = @transform_6, window_bounds = array<i64: 1, 1, 32>}, {transform_indices = @transform_7, window_bounds = array<i64: 1, 9, 32, 64>}, {transform_indices = @transform_8, window_bounds = array<i64: 1, 1, 64>}, {transform_indices = @transform_9, window_bounds = array<i64: 1, 1, 64, 32>}, {transform_indices = @transform_10, window_bounds = array<i64: 1, 1, 32>}, {transform_indices = @transform_11, window_bounds = array<i64: 1, 1, 32>}, {transform_indices = @transform_12, window_bounds = array<i64: 1, 1, 32>}, {transform_indices = @transform_13, window_bounds = array<i64: 1, 32, 32>}]} {
    %0 = arith.index_cast %arg0 : i32 to index
    %1 = memref.load %arg2[%0] : memref<2xi32, #tpu.memory_space<smem>>
    %2 = tpu.iota {dimensions = array<i32: 0>} : vector<32x1xi32>
    %3 = tpu.iota {dimensions = array<i32: 1>} : vector<1x32xi32>
    %4 = vector.broadcast %1 : i32 to vector<32x1xi32>
    %5 = arith.cmpi slt, %2, %4 : vector<32x1xi32>
    %6 = arith.extui %5 : vector<32x1xi1> to vector<32x1xi32>
    %7 = arith.sitofp %6 : vector<32x1xi32> to vector<32x1xf32>
    %8 = vector.broadcast %1 : i32 to vector<1x32xi32>
    %9 = arith.cmpi slt, %3, %8 : vector<1x32xi32>
    %cst = arith.constant 0.000000e+00 : f32
    %cst_0 = arith.constant -1.000000e+09 : f32
    %10 = vector.broadcast %cst : f32 to vector<1x32xf32>
    %11 = vector.broadcast %cst_0 : f32 to vector<1x32xf32>
    %12 = arith.select %9, %10, %11 : vector<1x32xi1>, vector<1x32xf32>
    %c0_i32 = arith.constant 0 : i32
    %13 = arith.cmpi eq, %arg1, %c0_i32 : i32
    %14 = arith.extui %13 : i1 to i32
    %c0_i32_1 = arith.constant 0 : i32
    %15 = arith.cmpi ne, %14, %c0_i32_1 : i32
    scf.if %15 {
      %c0_131 = arith.constant 0 : index
      %c0_132 = arith.constant 0 : index
      %c0_133 = arith.constant 0 : index
      %202 = vector.load %arg3[%c0_131, %c0_132, %c0_133] : memref<1x32x32xf32, #tpu.memory_space<vmem>>, vector<1x32x32xf32>
      %203 = vector.shape_cast %202 : vector<1x32x32xf32> to vector<32x32xf32>
      %c0_134 = arith.constant 0 : index
      %c0_135 = arith.constant 0 : index
      %c0_136 = arith.constant 0 : index
      %204 = vector.load %arg16[%c0_134, %c0_135, %c0_136] : memref<1x32x32xf32, #tpu.memory_space<vmem>>, vector<1x32x32xf32>
      %205 = vector.shape_cast %204 : vector<1x32x32xf32> to vector<32x32xf32>
      %206 = vector.shape_cast %203 : vector<32x32xf32> to vector<1x32x32xf32>
      tpu.vector_store %arg16[%c0_134, %c0_135, %c0_136], %206 {strides = array<i32>} : memref<1x32x32xf32, #tpu.memory_space<vmem>>, vector<1x32x32xf32>,
    } else {
    }
    %c0 = arith.constant 0 : index
    %c0_2 = arith.constant 0 : index
    %c0_3 = arith.constant 0 : index
    %16 = vector.load %arg16[%c0, %c0_2, %c0_3] : memref<1x32x32xf32, #tpu.memory_space<vmem>>, vector<1x32x32xf32>
    %17 = vector.shape_cast %16 : vector<1x32x32xf32> to vector<32x32xf32>
    %18 = arith.truncf %17 : vector<32x32xf32> to vector<32x32xbf16>
    %c0_4 = arith.constant 0 : index
    %c0_5 = arith.constant 0 : index
    %c0_6 = arith.constant 0 : index
    %19 = vector.load %arg4[%c0_4, %c0_5, %c0_6] : memref<1x32x96xbf16, #tpu.memory_space<vmem>>, vector<1x32x96xbf16>
    %20 = vector.shape_cast %19 : vector<1x32x96xbf16> to vector<32x96xbf16>
    %cst_7 = arith.constant dense<0.000000e+00> : vector<32x96xf32>
    %21 = tpu.matmul %18, %20, %cst_7 {dimension_numbers = #tpu.dot_dimension_numbers<[1], [0], [0], [1], [0, 0, 1, 1], [], []>} : vector<32x32xbf16>, vector<32x96xbf16>, vector<32x96xf32> -> vector<32x96xf32>
    %c0_8 = arith.constant 0 : index
    %c0_9 = arith.constant 0 : index
    %c0_10 = arith.constant 0 : index
    %22 = vector.load %arg5[%c0_8, %c0_9, %c0_10] : memref<1x1x96xf32, #tpu.memory_space<vmem>>, vector<1x1x96xf32>
    %23 = vector.shape_cast %22 : vector<1x1x96xf32> to vector<1x96xf32>
    %24 = vector.broadcast %23 : vector<1x96xf32> to vector<32x96xf32>
    %25 = arith.addf %21, %24 : vector<32x96xf32>
    %26 = arith.truncf %25 : vector<32x96xf32> to vector<32x96xbf16>
    %27 = vector.extract_strided_slice %26 {offsets = [0, 0], sizes = [32, 16], strides = [1, 1]} : vector<32x96xbf16> to vector<32x16xbf16>
    %28 = vector.extract_strided_slice %26 {offsets = [0, 32], sizes = [32, 16], strides = [1, 1]} : vector<32x96xbf16> to vector<32x16xbf16>
    %29 = vector.extract_strided_slice %26 {offsets = [0, 64], sizes = [32, 16], strides = [1, 1]} : vector<32x96xbf16> to vector<32x16xbf16>
    %cst_11 = arith.constant dense<0.000000e+00> : vector<32x32xf32>
    %30 = tpu.matmul %27, %28, %cst_11 {dimension_numbers = #tpu.dot_dimension_numbers<[1], [1], [0], [0], [0, 0, 1, 0], [], []>} : vector<32x16xbf16>, vector<32x16xbf16>, vector<32x32xf32> -> vector<32x32xf32>
    %31 = vector.broadcast %12 : vector<1x32xf32> to vector<32x32xf32>
    %32 = arith.addf %30, %31 : vector<32x32xf32>
    %cst_12 = arith.constant dense<0xFF800000> : vector<32xf32>
    %33 = vector.multi_reduction <maximumf>, %32, %cst_12 [1] : vector<32x32xf32> to vector<32xf32>
    %34 = vector.shape_cast %33 : vector<32xf32> to vector<32x1xf32>
    %35 = vector.broadcast %34 : vector<32x1xf32> to vector<32x32xf32>
    %36 = arith.subf %32, %35 : vector<32x32xf32>
    %37 = math.exp %36 : vector<32x32xf32>
    %cst_13 = arith.constant dense<0.000000e+00> : vector<32xf32>
    %38 = vector.multi_reduction <add>, %37, %cst_13 [1] : vector<32x32xf32> to vector<32xf32>
    %39 = vector.shape_cast %38 : vector<32xf32> to vector<32x1xf32>
    %40 = arith.truncf %37 : vector<32x32xf32> to vector<32x32xbf16>
    %cst_14 = arith.constant dense<0.000000e+00> : vector<32x16xf32>
    %41 = tpu.matmul %40, %29, %cst_14 {dimension_numbers = #tpu.dot_dimension_numbers<[1], [0], [0], [1], [0, 0, 1, 1], [], []>} : vector<32x32xbf16>, vector<32x16xbf16>, vector<32x16xf32> -> vector<32x16xf32>
    %42 = tpu.reciprocal %39 {approx = true} : vector<32x1xf32> -> vector<32x1xf32>
    %43 = vector.broadcast %42 : vector<32x1xf32> to vector<32x16xf32>
    %44 = arith.mulf %41, %43 : vector<32x16xf32>
    %45 = arith.truncf %44 : vector<32x16xf32> to vector<32x16xbf16>
    %c0_15 = arith.constant 0 : index
    %c0_16 = arith.constant 0 : index
    %46 = vector.load %arg17[%c0_15, %c0_16] : memref<32x32xbf16, #tpu.memory_space<vmem>>, vector<32x16xbf16>
    tpu.vector_store %arg17[%c0_15, %c0_16], %45 {strides = array<i32>} : memref<32x32xbf16, #tpu.memory_space<vmem>>, vector<32x16xbf16>,
    %47 = vector.extract_strided_slice %26 {offsets = [0, 16], sizes = [32, 16], strides = [1, 1]} : vector<32x96xbf16> to vector<32x16xbf16>
    %48 = vector.extract_strided_slice %26 {offsets = [0, 48], sizes = [32, 16], strides = [1, 1]} : vector<32x96xbf16> to vector<32x16xbf16>
    %49 = vector.extract_strided_slice %26 {offsets = [0, 80], sizes = [32, 16], strides = [1, 1]} : vector<32x96xbf16> to vector<32x16xbf16>
    %cst_17 = arith.constant dense<0.000000e+00> : vector<32x32xf32>
    %50 = tpu.matmul %47, %48, %cst_17 {dimension_numbers = #tpu.dot_dimension_numbers<[1], [1], [0], [0], [0, 0, 1, 0], [], []>} : vector<32x16xbf16>, vector<32x16xbf16>, vector<32x32xf32> -> vector<32x32xf32>
    %51 = vector.broadcast %12 : vector<1x32xf32> to vector<32x32xf32>
    %52 = arith.addf %50, %51 : vector<32x32xf32>
    %cst_18 = arith.constant dense<0xFF800000> : vector<32xf32>
    %53 = vector.multi_reduction <maximumf>, %52, %cst_18 [1] : vector<32x32xf32> to vector<32xf32>
    %54 = vector.shape_cast %53 : vector<32xf32> to vector<32x1xf32>
    %55 = vector.broadcast %54 : vector<32x1xf32> to vector<32x32xf32>
    %56 = arith.subf %52, %55 : vector<32x32xf32>
    %57 = math.exp %56 : vector<32x32xf32>
    %cst_19 = arith.constant dense<0.000000e+00> : vector<32xf32>
    %58 = vector.multi_reduction <add>, %57, %cst_19 [1] : vector<32x32xf32> to vector<32xf32>
    %59 = vector.shape_cast %58 : vector<32xf32> to vector<32x1xf32>
    %60 = arith.truncf %57 : vector<32x32xf32> to vector<32x32xbf16>
    %cst_20 = arith.constant dense<0.000000e+00> : vector<32x16xf32>
    %61 = tpu.matmul %60, %49, %cst_20 {dimension_numbers = #tpu.dot_dimension_numbers<[1], [0], [0], [1], [0, 0, 1, 1], [], []>} : vector<32x32xbf16>, vector<32x16xbf16>, vector<32x16xf32> -> vector<32x16xf32>
    %62 = tpu.reciprocal %59 {approx = true} : vector<32x1xf32> -> vector<32x1xf32>
    %63 = vector.broadcast %62 : vector<32x1xf32> to vector<32x16xf32>
    %64 = arith.mulf %61, %63 : vector<32x16xf32>
    %65 = arith.truncf %64 : vector<32x16xf32> to vector<32x16xbf16>
    %c0_21 = arith.constant 0 : index
    %c16 = arith.constant 16 : index
    %66 = vector.load %arg17[%c0_21, %c16] : memref<32x32xbf16, #tpu.memory_space<vmem>>, vector<32x16xbf16>
    tpu.vector_store %arg17[%c0_21, %c16], %65 {strides = array<i32>} : memref<32x32xbf16, #tpu.memory_space<vmem>>, vector<32x16xbf16>,
    %c0_22 = arith.constant 0 : index
    %c0_23 = arith.constant 0 : index
    %67 = vector.load %arg17[%c0_22, %c0_23] : memref<32x32xbf16, #tpu.memory_space<vmem>>, vector<32x32xbf16>
    %c0_24 = arith.constant 0 : index
    %c0_25 = arith.constant 0 : index
    %c0_26 = arith.constant 0 : index
    %68 = vector.load %arg6[%c0_24, %c0_25, %c0_26] : memref<1x32x32xbf16, #tpu.memory_space<vmem>>, vector<1x32x32xbf16>
    %69 = vector.shape_cast %68 : vector<1x32x32xbf16> to vector<32x32xbf16>
    %cst_27 = arith.constant dense<0.000000e+00> : vector<32x32xf32>
    %70 = tpu.matmul %67, %69, %cst_27 {dimension_numbers = #tpu.dot_dimension_numbers<[1], [0], [0], [1], [0, 0, 1, 1], [], []>} : vector<32x32xbf16>, vector<32x32xbf16>, vector<32x32xf32> -> vector<32x32xf32>
    %c0_28 = arith.constant 0 : index
    %c0_29 = arith.constant 0 : index
    %c0_30 = arith.constant 0 : index
    %71 = vector.load %arg7[%c0_28, %c0_29, %c0_30] : memref<1x1x32xf32, #tpu.memory_space<vmem>>, vector<1x1x32xf32>
    %72 = vector.shape_cast %71 : vector<1x1x32xf32> to vector<1x32xf32>
    %73 = vector.broadcast %72 : vector<1x32xf32> to vector<32x32xf32>
    %74 = arith.addf %70, %73 : vector<32x32xf32>
    %75 = arith.addf %74, %17 : vector<32x32xf32>
    %c0_31 = arith.constant 0 : index
    %c0_32 = arith.constant 0 : index
    %c0_33 = arith.constant 0 : index
    %76 = vector.load %arg8[%c0_31, %c0_32, %c0_33] : memref<1x1x32xf32, #tpu.memory_space<vmem>>, vector<1x1x32xf32>
    %77 = vector.shape_cast %76 : vector<1x1x32xf32> to vector<1x32xf32>
    %c0_34 = arith.constant 0 : index
    %c0_35 = arith.constant 0 : index
    %c0_36 = arith.constant 0 : index
    %78 = vector.load %arg9[%c0_34, %c0_35, %c0_36] : memref<1x1x32xf32, #tpu.memory_space<vmem>>, vector<1x1x32xf32>
    %79 = vector.shape_cast %78 : vector<1x1x32xf32> to vector<1x32xf32>
    %cst_37 = arith.constant dense<0.000000e+00> : vector<32xf32>
    %80 = vector.multi_reduction <add>, %75, %cst_37 [1] : vector<32x32xf32> to vector<32xf32>
    %81 = vector.shape_cast %80 : vector<32xf32> to vector<32x1xf32>
    %cst_38 = arith.constant 3.200000e+01 : f32
    %82 = vector.broadcast %cst_38 : f32 to vector<32x1xf32>
    %83 = arith.divf %81, %82 : vector<32x1xf32>
    %84 = vector.broadcast %83 : vector<32x1xf32> to vector<32x32xf32>
    %85 = arith.subf %75, %84 : vector<32x32xf32>
    %86 = arith.mulf %85, %85 : vector<32x32xf32>
    %cst_39 = arith.constant dense<0.000000e+00> : vector<32xf32>
    %87 = vector.multi_reduction <add>, %86, %cst_39 [1] : vector<32x32xf32> to vector<32xf32>
    %88 = vector.shape_cast %87 : vector<32xf32> to vector<32x1xf32>
    %cst_40 = arith.constant 3.200000e+01 : f32
    %89 = vector.broadcast %cst_40 : f32 to vector<32x1xf32>
    %90 = arith.divf %88, %89 : vector<32x1xf32>
    %91 = vector.broadcast %83 : vector<32x1xf32> to vector<32x32xf32>
    %92 = arith.subf %75, %91 : vector<32x32xf32>
    %cst_41 = arith.constant 9.99999974E-6 : f32
    %93 = vector.broadcast %cst_41 : f32 to vector<32x1xf32>
    %94 = arith.addf %90, %93 : vector<32x1xf32>
    %95 = math.rsqrt %94 : vector<32x1xf32>
    %96 = vector.broadcast %95 : vector<32x1xf32> to vector<32x32xf32>
    %97 = arith.mulf %92, %96 : vector<32x32xf32>
    %98 = vector.broadcast %77 : vector<1x32xf32> to vector<32x32xf32>
    %99 = arith.mulf %97, %98 : vector<32x32xf32>
    %100 = vector.broadcast %79 : vector<1x32xf32> to vector<32x32xf32>
    %101 = arith.addf %99, %100 : vector<32x32xf32>
    %102 = vector.broadcast %7 : vector<32x1xf32> to vector<32x32xf32>
    %103 = arith.mulf %101, %102 : vector<32x32xf32>
    %104 = arith.truncf %103 : vector<32x32xf32> to vector<32x32xbf16>
    %c0_42 = arith.constant 0 : index
    %c0_43 = arith.constant 0 : index
    %c0_44 = arith.constant 0 : index
    %105 = vector.load %arg11[%c0_42, %c0_43, %c0_44] : memref<1x1x64xf32, #tpu.memory_space<vmem>>, vector<1x1x64xf32>
    %106 = vector.shape_cast %105 : vector<1x1x64xf32> to vector<1x64xf32>
    %cst_45 = arith.constant 0.000000e+00 : bf16
    %107 = vector.broadcast %cst_45 : bf16 to vector<4x32xbf16>
    %c0_46 = arith.constant 0 : index
    %c0_47 = arith.constant 0 : index
    %108 = vector.load %arg18[%c0_46, %c0_47] : memref<40x32xbf16, #tpu.memory_space<vmem>>, vector<4x32xbf16>
    tpu.vector_store %arg18[%c0_46, %c0_47], %107 {strides = array<i32>} : memref<40x32xbf16, #tpu.memory_space<vmem>>, vector<4x32xbf16>,
    %c4 = arith.constant 4 : index
    %c0_48 = arith.constant 0 : index
    %109 = vector.load %arg18[%c4, %c0_48] : memref<40x32xbf16, #tpu.memory_space<vmem>>, vector<32x32xbf16>
    tpu.vector_store %arg18[%c4, %c0_48], %104 {strides = array<i32>} : memref<40x32xbf16, #tpu.memory_space<vmem>>, vector<32x32xbf16>,
    %cst_49 = arith.constant 0.000000e+00 : bf16
    %110 = vector.broadcast %cst_49 : bf16 to vector<4x32xbf16>
    %c36 = arith.constant 36 : index
    %c0_50 = arith.constant 0 : index
    %111 = vector.load %arg18[%c36, %c0_50] : memref<40x32xbf16, #tpu.memory_space<vmem>>, vector<4x32xbf16>
    tpu.vector_store %arg18[%c36, %c0_50], %110 {strides = array<i32>} : memref<40x32xbf16, #tpu.memory_space<vmem>>, vector<4x32xbf16>,
    %cst_51 = arith.constant 0.000000e+00 : f32
    %112 = vector.broadcast %cst_51 : f32 to vector<32x64xf32>
    %c0_52 = arith.constant 0 : index
    %c0_53 = arith.constant 0 : index
    %113 = vector.load %arg18[%c0_52, %c0_53] : memref<40x32xbf16, #tpu.memory_space<vmem>>, vector<32x32xbf16>
    %c0_54 = arith.constant 0 : index
    %c0_55 = arith.constant 0 : index
    %c0_56 = arith.constant 0 : index
    %c0_57 = arith.constant 0 : index
    %114 = vector.load %arg10[%c0_54, %c0_55, %c0_56, %c0_57] : memref<1x9x32x64xbf16, #tpu.memory_space<vmem>>, vector<1x1x32x64xbf16>
    %115 = vector.shape_cast %114 : vector<1x1x32x64xbf16> to vector<32x64xbf16>
    %cst_58 = arith.constant dense<0.000000e+00> : vector<32x64xf32>
    %116 = tpu.matmul %113, %115, %cst_58 {dimension_numbers = #tpu.dot_dimension_numbers<[1], [0], [0], [1], [0, 0, 1, 1], [], []>} : vector<32x32xbf16>, vector<32x64xbf16>, vector<32x64xf32> -> vector<32x64xf32>
    %117 = arith.addf %112, %116 : vector<32x64xf32>
    %c1 = arith.constant 1 : index
    %c0_59 = arith.constant 0 : index
    %118 = vector.load %arg18[%c1, %c0_59] : memref<40x32xbf16, #tpu.memory_space<vmem>>, vector<32x32xbf16>
    %c0_60 = arith.constant 0 : index
    %c1_61 = arith.constant 1 : index
    %c0_62 = arith.constant 0 : index
    %c0_63 = arith.constant 0 : index
    %119 = vector.load %arg10[%c0_60, %c1_61, %c0_62, %c0_63] : memref<1x9x32x64xbf16, #tpu.memory_space<vmem>>, vector<1x1x32x64xbf16>
    %120 = vector.shape_cast %119 : vector<1x1x32x64xbf16> to vector<32x64xbf16>
    %cst_64 = arith.constant dense<0.000000e+00> : vector<32x64xf32>
    %121 = tpu.matmul %118, %120, %cst_64 {dimension_numbers = #tpu.dot_dimension_numbers<[1], [0], [0], [1], [0, 0, 1, 1], [], []>} : vector<32x32xbf16>, vector<32x64xbf16>, vector<32x64xf32> -> vector<32x64xf32>
    %122 = arith.addf %117, %121 : vector<32x64xf32>
    %c2 = arith.constant 2 : index
    %c0_65 = arith.constant 0 : index
    %123 = vector.load %arg18[%c2, %c0_65] : memref<40x32xbf16, #tpu.memory_space<vmem>>, vector<32x32xbf16>
    %c0_66 = arith.constant 0 : index
    %c2_67 = arith.constant 2 : index
    %c0_68 = arith.constant 0 : index
    %c0_69 = arith.constant 0 : index
    %124 = vector.load %arg10[%c0_66, %c2_67, %c0_68, %c0_69] : memref<1x9x32x64xbf16, #tpu.memory_space<vmem>>, vector<1x1x32x64xbf16>
    %125 = vector.shape_cast %124 : vector<1x1x32x64xbf16> to vector<32x64xbf16>
    %cst_70 = arith.constant dense<0.000000e+00> : vector<32x64xf32>
    %126 = tpu.matmul %123, %125, %cst_70 {dimension_numbers = #tpu.dot_dimension_numbers<[1], [0], [0], [1], [0, 0, 1, 1], [], []>} : vector<32x32xbf16>, vector<32x64xbf16>, vector<32x64xf32> -> vector<32x64xf32>
    %127 = arith.addf %122, %126 : vector<32x64xf32>
    %c3 = arith.constant 3 : index
    %c0_71 = arith.constant 0 : index
    %128 = vector.load %arg18[%c3, %c0_71] : memref<40x32xbf16, #tpu.memory_space<vmem>>, vector<32x32xbf16>
    %c0_72 = arith.constant 0 : index
    %c3_73 = arith.constant 3 : index
    %c0_74 = arith.constant 0 : index
    %c0_75 = arith.constant 0 : index
    %129 = vector.load %arg10[%c0_72, %c3_73, %c0_74, %c0_75] : memref<1x9x32x64xbf16, #tpu.memory_space<vmem>>, vector<1x1x32x64xbf16>
    %130 = vector.shape_cast %129 : vector<1x1x32x64xbf16> to vector<32x64xbf16>
    %cst_76 = arith.constant dense<0.000000e+00> : vector<32x64xf32>
    %131 = tpu.matmul %128, %130, %cst_76 {dimension_numbers = #tpu.dot_dimension_numbers<[1], [0], [0], [1], [0, 0, 1, 1], [], []>} : vector<32x32xbf16>, vector<32x64xbf16>, vector<32x64xf32> -> vector<32x64xf32>
    %132 = arith.addf %127, %131 : vector<32x64xf32>
    %c4_77 = arith.constant 4 : index
    %c0_78 = arith.constant 0 : index
    %133 = vector.load %arg18[%c4_77, %c0_78] : memref<40x32xbf16, #tpu.memory_space<vmem>>, vector<32x32xbf16>
    %c0_79 = arith.constant 0 : index
    %c4_80 = arith.constant 4 : index
    %c0_81 = arith.constant 0 : index
    %c0_82 = arith.constant 0 : index
    %134 = vector.load %arg10[%c0_79, %c4_80, %c0_81, %c0_82] : memref<1x9x32x64xbf16, #tpu.memory_space<vmem>>, vector<1x1x32x64xbf16>
    %135 = vector.shape_cast %134 : vector<1x1x32x64xbf16> to vector<32x64xbf16>
    %cst_83 = arith.constant dense<0.000000e+00> : vector<32x64xf32>
    %136 = tpu.matmul %133, %135, %cst_83 {dimension_numbers = #tpu.dot_dimension_numbers<[1], [0], [0], [1], [0, 0, 1, 1], [], []>} : vector<32x32xbf16>, vector<32x64xbf16>, vector<32x64xf32> -> vector<32x64xf32>
    %137 = arith.addf %132, %136 : vector<32x64xf32>
    %c5 = arith.constant 5 : index
    %c0_84 = arith.constant 0 : index
    %138 = vector.load %arg18[%c5, %c0_84] : memref<40x32xbf16, #tpu.memory_space<vmem>>, vector<32x32xbf16>
    %c0_85 = arith.constant 0 : index
    %c5_86 = arith.constant 5 : index
    %c0_87 = arith.constant 0 : index
    %c0_88 = arith.constant 0 : index
    %139 = vector.load %arg10[%c0_85, %c5_86, %c0_87, %c0_88] : memref<1x9x32x64xbf16, #tpu.memory_space<vmem>>, vector<1x1x32x64xbf16>
    %140 = vector.shape_cast %139 : vector<1x1x32x64xbf16> to vector<32x64xbf16>
    %cst_89 = arith.constant dense<0.000000e+00> : vector<32x64xf32>
    %141 = tpu.matmul %138, %140, %cst_89 {dimension_numbers = #tpu.dot_dimension_numbers<[1], [0], [0], [1], [0, 0, 1, 1], [], []>} : vector<32x32xbf16>, vector<32x64xbf16>, vector<32x64xf32> -> vector<32x64xf32>
    %142 = arith.addf %137, %141 : vector<32x64xf32>
    %c6 = arith.constant 6 : index
    %c0_90 = arith.constant 0 : index
    %143 = vector.load %arg18[%c6, %c0_90] : memref<40x32xbf16, #tpu.memory_space<vmem>>, vector<32x32xbf16>
    %c0_91 = arith.constant 0 : index
    %c6_92 = arith.constant 6 : index
    %c0_93 = arith.constant 0 : index
    %c0_94 = arith.constant 0 : index
    %144 = vector.load %arg10[%c0_91, %c6_92, %c0_93, %c0_94] : memref<1x9x32x64xbf16, #tpu.memory_space<vmem>>, vector<1x1x32x64xbf16>
    %145 = vector.shape_cast %144 : vector<1x1x32x64xbf16> to vector<32x64xbf16>
    %cst_95 = arith.constant dense<0.000000e+00> : vector<32x64xf32>
    %146 = tpu.matmul %143, %145, %cst_95 {dimension_numbers = #tpu.dot_dimension_numbers<[1], [0], [0], [1], [0, 0, 1, 1], [], []>} : vector<32x32xbf16>, vector<32x64xbf16>, vector<32x64xf32> -> vector<32x64xf32>
    %147 = arith.addf %142, %146 : vector<32x64xf32>
    %c7 = arith.constant 7 : index
    %c0_96 = arith.constant 0 : index
    %148 = vector.load %arg18[%c7, %c0_96] : memref<40x32xbf16, #tpu.memory_space<vmem>>, vector<32x32xbf16>
    %c0_97 = arith.constant 0 : index
    %c7_98 = arith.constant 7 : index
    %c0_99 = arith.constant 0 : index
    %c0_100 = arith.constant 0 : index
    %149 = vector.load %arg10[%c0_97, %c7_98, %c0_99, %c0_100] : memref<1x9x32x64xbf16, #tpu.memory_space<vmem>>, vector<1x1x32x64xbf16>
    %150 = vector.shape_cast %149 : vector<1x1x32x64xbf16> to vector<32x64xbf16>
    %cst_101 = arith.constant dense<0.000000e+00> : vector<32x64xf32>
    %151 = tpu.matmul %148, %150, %cst_101 {dimension_numbers = #tpu.dot_dimension_numbers<[1], [0], [0], [1], [0, 0, 1, 1], [], []>} : vector<32x32xbf16>, vector<32x64xbf16>, vector<32x64xf32> -> vector<32x64xf32>
    %152 = arith.addf %147, %151 : vector<32x64xf32>
    %c8 = arith.constant 8 : index
    %c0_102 = arith.constant 0 : index
    %153 = vector.load %arg18[%c8, %c0_102] : memref<40x32xbf16, #tpu.memory_space<vmem>>, vector<32x32xbf16>
    %c0_103 = arith.constant 0 : index
    %c8_104 = arith.constant 8 : index
    %c0_105 = arith.constant 0 : index
    %c0_106 = arith.constant 0 : index
    %154 = vector.load %arg10[%c0_103, %c8_104, %c0_105, %c0_106] : memref<1x9x32x64xbf16, #tpu.memory_space<vmem>>, vector<1x1x32x64xbf16>
    %155 = vector.shape_cast %154 : vector<1x1x32x64xbf16> to vector<32x64xbf16>
    %cst_107 = arith.constant dense<0.000000e+00> : vector<32x64xf32>
    %156 = tpu.matmul %153, %155, %cst_107 {dimension_numbers = #tpu.dot_dimension_numbers<[1], [0], [0], [1], [0, 0, 1, 1], [], []>} : vector<32x32xbf16>, vector<32x64xbf16>, vector<32x64xf32> -> vector<32x64xf32>
    %157 = arith.addf %152, %156 : vector<32x64xf32>
    %158 = vector.broadcast %106 : vector<1x64xf32> to vector<32x64xf32>
    %159 = arith.addf %157, %158 : vector<32x64xf32>
    %cst_108 = arith.constant 0.000000e+00 : f32
    %160 = vector.broadcast %cst_108 : f32 to vector<32x64xf32>
    %161 = arith.maximumf %159, %160 : vector<32x64xf32>
    %162 = arith.truncf %161 : vector<32x64xf32> to vector<32x64xbf16>
    %c0_109 = arith.constant 0 : index
    %c0_110 = arith.constant 0 : index
    %c0_111 = arith.constant 0 : index
    %163 = vector.load %arg13[%c0_109, %c0_110, %c0_111] : memref<1x1x32xf32, #tpu.memory_space<vmem>>, vector<1x1x32xf32>
    %164 = vector.shape_cast %163 : vector<1x1x32xf32> to vector<1x32xf32>
    %c0_112 = arith.constant 0 : index
    %c0_113 = arith.constant 0 : index
    %c0_114 = arith.constant 0 : index
    %c0_115 = arith.constant 0 : index
    %165 = vector.load %arg12[%c0_112, %c0_113, %c0_114, %c0_115] : memref<1x1x64x32xbf16, #tpu.memory_space<vmem>>, vector<1x1x64x32xbf16>
    %166 = vector.shape_cast %165 : vector<1x1x64x32xbf16> to vector<64x32xbf16>
    %cst_116 = arith.constant dense<0.000000e+00> : vector<32x32xf32>
    %167 = tpu.matmul %162, %166, %cst_116 {dimension_numbers = #tpu.dot_dimension_numbers<[1], [0], [0], [1], [0, 0, 1, 1], [], []>} : vector<32x64xbf16>, vector<64x32xbf16>, vector<32x32xf32> -> vector<32x32xf32>
    %168 = vector.broadcast %164 : vector<1x32xf32> to vector<32x32xf32>
    %169 = arith.addf %167, %168 : vector<32x32xf32>
    %170 = arith.addf %169, %103 : vector<32x32xf32>
    %c0_117 = arith.constant 0 : index
    %c0_118 = arith.constant 0 : index
    %c0_119 = arith.constant 0 : index
    %171 = vector.load %arg14[%c0_117, %c0_118, %c0_119] : memref<1x1x32xf32, #tpu.memory_space<vmem>>, vector<1x1x32xf32>
    %172 = vector.shape_cast %171 : vector<1x1x32xf32> to vector<1x32xf32>
    %c0_120 = arith.constant 0 : index
    %c0_121 = arith.constant 0 : index
    %c0_122 = arith.constant 0 : index
    %173 = vector.load %arg15[%c0_120, %c0_121, %c0_122] : memref<1x1x32xf32, #tpu.memory_space<vmem>>, vector<1x1x32xf32>
    %174 = vector.shape_cast %173 : vector<1x1x32xf32> to vector<1x32xf32>
    %cst_123 = arith.constant dense<0.000000e+00> : vector<32xf32>
    %175 = vector.multi_reduction <add>, %170, %cst_123 [1] : vector<32x32xf32> to vector<32xf32>
    %176 = vector.shape_cast %175 : vector<32xf32> to vector<32x1xf32>
    %cst_124 = arith.constant 3.200000e+01 : f32
    %177 = vector.broadcast %cst_124 : f32 to vector<32x1xf32>
    %178 = arith.divf %176, %177 : vector<32x1xf32>
    %179 = vector.broadcast %178 : vector<32x1xf32> to vector<32x32xf32>
    %180 = arith.subf %170, %179 : vector<32x32xf32>
    %181 = arith.mulf %180, %180 : vector<32x32xf32>
    %cst_125 = arith.constant dense<0.000000e+00> : vector<32xf32>
    %182 = vector.multi_reduction <add>, %181, %cst_125 [1] : vector<32x32xf32> to vector<32xf32>
    %183 = vector.shape_cast %182 : vector<32xf32> to vector<32x1xf32>
    %cst_126 = arith.constant 3.200000e+01 : f32
    %184 = vector.broadcast %cst_126 : f32 to vector<32x1xf32>
    %185 = arith.divf %183, %184 : vector<32x1xf32>
    %186 = vector.broadcast %178 : vector<32x1xf32> to vector<32x32xf32>
    %187 = arith.subf %170, %186 : vector<32x32xf32>
    %cst_127 = arith.constant 9.99999974E-6 : f32
    %188 = vector.broadcast %cst_127 : f32 to vector<32x1xf32>
    %189 = arith.addf %185, %188 : vector<32x1xf32>
    %190 = math.rsqrt %189 : vector<32x1xf32>
    %191 = vector.broadcast %190 : vector<32x1xf32> to vector<32x32xf32>
    %192 = arith.mulf %187, %191 : vector<32x32xf32>
    %193 = vector.broadcast %172 : vector<1x32xf32> to vector<32x32xf32>
    %194 = arith.mulf %192, %193 : vector<32x32xf32>
    %195 = vector.broadcast %174 : vector<1x32xf32> to vector<32x32xf32>
    %196 = arith.addf %194, %195 : vector<32x32xf32>
    %197 = vector.broadcast %7 : vector<32x1xf32> to vector<32x32xf32>
    %198 = arith.mulf %196, %197 : vector<32x32xf32>
    %c0_128 = arith.constant 0 : index
    %c0_129 = arith.constant 0 : index
    %c0_130 = arith.constant 0 : index
    %199 = vector.load %arg16[%c0_128, %c0_129, %c0_130] : memref<1x32x32xf32, #tpu.memory_space<vmem>>, vector<1x32x32xf32>
    %200 = vector.shape_cast %199 : vector<1x32x32xf32> to vector<32x32xf32>
    %201 = vector.shape_cast %198 : vector<32x32xf32> to vector<1x32x32xf32>
    tpu.vector_store %arg16[%c0_128, %c0_129, %c0_130], %201 {strides = array<i32>} : memref<1x32x32xf32, #tpu.memory_space<vmem>>, vector<1x32x32xf32>,
    return
  }
  func.func @transform_0(%arg0: i32, %arg1: i32, %arg2: memref<2xi32, #tpu.memory_space<smem>>) -> (i32, i32, i32) {
    %c0_i32 = arith.constant 0 : i32
    %c0_i32_0 = arith.constant 0 : i32
    %c0_i32_1 = arith.constant 0 : i32
    return %arg0, %c0_i32, %c0_i32_0 : i32, i32, i32
  }
  func.func @transform_1(%arg0: i32, %arg1: i32, %arg2: memref<2xi32, #tpu.memory_space<smem>>) -> (i32, i32, i32) {
    %c0_i32 = arith.constant 0 : i32
    %c0_i32_0 = arith.constant 0 : i32
    %c0_i32_1 = arith.constant 0 : i32
    return %arg1, %c0_i32, %c0_i32_0 : i32, i32, i32
  }
  func.func @transform_2(%arg0: i32, %arg1: i32, %arg2: memref<2xi32, #tpu.memory_space<smem>>) -> (i32, i32, i32) {
    %c0_i32 = arith.constant 0 : i32
    %c0_i32_0 = arith.constant 0 : i32
    %c0_i32_1 = arith.constant 0 : i32
    return %arg1, %c0_i32, %c0_i32_0 : i32, i32, i32
  }
  func.func @transform_3(%arg0: i32, %arg1: i32, %arg2: memref<2xi32, #tpu.memory_space<smem>>) -> (i32, i32, i32) {
    %c0_i32 = arith.constant 0 : i32
    %c0_i32_0 = arith.constant 0 : i32
    %c0_i32_1 = arith.constant 0 : i32
    return %arg1, %c0_i32, %c0_i32_0 : i32, i32, i32
  }
  func.func @transform_4(%arg0: i32, %arg1: i32, %arg2: memref<2xi32, #tpu.memory_space<smem>>) -> (i32, i32, i32) {
    %c0_i32 = arith.constant 0 : i32
    %c0_i32_0 = arith.constant 0 : i32
    %c0_i32_1 = arith.constant 0 : i32
    return %arg1, %c0_i32, %c0_i32_0 : i32, i32, i32
  }
  func.func @transform_5(%arg0: i32, %arg1: i32, %arg2: memref<2xi32, #tpu.memory_space<smem>>) -> (i32, i32, i32) {
    %c0_i32 = arith.constant 0 : i32
    %c0_i32_0 = arith.constant 0 : i32
    %c0_i32_1 = arith.constant 0 : i32
    return %arg1, %c0_i32, %c0_i32_0 : i32, i32, i32
  }
  func.func @transform_6(%arg0: i32, %arg1: i32, %arg2: memref<2xi32, #tpu.memory_space<smem>>) -> (i32, i32, i32) {
    %c0_i32 = arith.constant 0 : i32
    %c0_i32_0 = arith.constant 0 : i32
    %c0_i32_1 = arith.constant 0 : i32
    return %arg1, %c0_i32, %c0_i32_0 : i32, i32, i32
  }
  func.func @transform_7(%arg0: i32, %arg1: i32, %arg2: memref<2xi32, #tpu.memory_space<smem>>) -> (i32, i32, i32, i32) {
    %c0_i32 = arith.constant 0 : i32
    %c0_i32_0 = arith.constant 0 : i32
    %c0_i32_1 = arith.constant 0 : i32
    %c0_i32_2 = arith.constant 0 : i32
    return %arg1, %c0_i32, %c0_i32_0, %c0_i32_1 : i32, i32, i32, i32
  }
  func.func @transform_8(%arg0: i32, %arg1: i32, %arg2: memref<2xi32, #tpu.memory_space<smem>>) -> (i32, i32, i32) {
    %c0_i32 = arith.constant 0 : i32
    %c0_i32_0 = arith.constant 0 : i32
    %c0_i32_1 = arith.constant 0 : i32
    return %arg1, %c0_i32, %c0_i32_0 : i32, i32, i32
  }
  func.func @transform_9(%arg0: i32, %arg1: i32, %arg2: memref<2xi32, #tpu.memory_space<smem>>) -> (i32, i32, i32, i32) {
    %c0_i32 = arith.constant 0 : i32
    %c0_i32_0 = arith.constant 0 : i32
    %c0_i32_1 = arith.constant 0 : i32
    %c0_i32_2 = arith.constant 0 : i32
    return %arg1, %c0_i32, %c0_i32_0, %c0_i32_1 : i32, i32, i32, i32
  }
  func.func @transform_10(%arg0: i32, %arg1: i32, %arg2: memref<2xi32, #tpu.memory_space<smem>>) -> (i32, i32, i32) {
    %c0_i32 = arith.constant 0 : i32
    %c0_i32_0 = arith.constant 0 : i32
    %c0_i32_1 = arith.constant 0 : i32
    return %arg1, %c0_i32, %c0_i32_0 : i32, i32, i32
  }
  func.func @transform_11(%arg0: i32, %arg1: i32, %arg2: memref<2xi32, #tpu.memory_space<smem>>) -> (i32, i32, i32) {
    %c0_i32 = arith.constant 0 : i32
    %c0_i32_0 = arith.constant 0 : i32
    %c0_i32_1 = arith.constant 0 : i32
    return %arg1, %c0_i32, %c0_i32_0 : i32, i32, i32
  }
  func.func @transform_12(%arg0: i32, %arg1: i32, %arg2: memref<2xi32, #tpu.memory_space<smem>>) -> (i32, i32, i32) {
    %c0_i32 = arith.constant 0 : i32
    %c0_i32_0 = arith.constant 0 : i32
    %c0_i32_1 = arith.constant 0 : i32
    return %arg1, %c0_i32, %c0_i32_0 : i32, i32, i32
  }
  func.func @transform_13(%arg0: i32, %arg1: i32, %arg2: memref<2xi32, #tpu.memory_space<smem>>) -> (i32, i32, i32) {
    %c0_i32 = arith.constant 0 : i32
    %c0_i32_0 = arith.constant 0 : i32
    %c0_i32_1 = arith.constant 0 : i32
    return %arg0, %c0_i32, %c0_i32_0 : i32, i32, i32
  }
}

</mosaic_0001>

<llo_original>
// kernel: tpu_custom_call.1
$region0: #{tpu_custom_call.1}
  #allocation0 [shape = 'u32[]', space=smem, size = 0x4, offset = 0x4, fixed_abs, tag = 'smem constant byte address 0x4 - core index']
  #allocation1 [shape = 'u32[72,128]{1,0:T(1,128)}', space=vmem, size = 0x9000, scoped, tag = 'internal scratch']
  #allocation2 [shape = 'bf16[32,32]{1,0:T(8,128)(2,1)}', space=vmem, size = 0x2000, scoped, tag = 'scratch operand']
  #allocation3 [shape = 'bf16[40,32]{1,0:T(8,128)(2,1)}', space=vmem, size = 0x2800, scoped, tag = 'scratch operand']
  #allocation4 [shape = 'bf16[8,128]{1,0:T(8,128)(2,1)}', space=vmem, size = 0x800, scoped, tag = 'scratch operand']
  #allocation5 [shape = 's32[1]{0}', space=sflag, size = 0x4, scoped, tag = 'scoped memory for tpu_custom_call.1']
  #allocation6 [shape = 'u8[512]{0}', space=smem, size = 0x200, scoped, tag = 'prefetched SMEM operand 0']
  %s0 = inlined_call_operand.hbm [shape: s32[2], index: 0, kind: input, shape index: {}]
  %s1 = inlined_call_operand.vmem [shape: f32[2,32,32], index: 1, kind: input, shape index: {}]
  %s2 = inlined_call_operand.vmem [shape: bf16[2,32,96], index: 2, kind: input, shape index: {}]
  %s3 = inlined_call_operand.hbm [shape: f32[2,1,96], index: 3, kind: input, shape index: {}]
  %s4 = inlined_call_operand.hbm [shape: bf16[2,32,32], index: 4, kind: input, shape index: {}]
  %s5 = inlined_call_operand.vmem [shape: f32[2,1,32], index: 5, kind: input, shape index: {}]
  %s6 = inlined_call_operand.vmem [shape: f32[2,1,32], index: 6, kind: input, shape index: {}]
  %s7 = inlined_call_operand.hbm [shape: f32[2,1,32], index: 7, kind: input, shape index: {}]
  %s8 = inlined_call_operand.hbm [shape: bf16[2,9,32,64], index: 8, kind: input, shape index: {}]
  %s9 = inlined_call_operand.vmem [shape: f32[2,1,64], index: 9, kind: input, shape index: {}]
  %s10 = inlined_call_operand.vmem [shape: bf16[2,1,64,32], index: 10, kind: input, shape index: {}]
  %s11 = inlined_call_operand.vmem [shape: f32[2,1,32], index: 11, kind: input, shape index: {}]
  %s12 = inlined_call_operand.vmem [shape: f32[2,1,32], index: 12, kind: input, shape index: {}]
  %s13 = inlined_call_operand.hbm [shape: f32[2,1,32], index: 13, kind: input, shape index: {}]
  %s14 = inlined_call_operand.hbm [shape: f32[2,32,32], index: 14, kind: output, shape index: {}]
  %s15 = sld [smem:[#allocation0]]
  $region109: #{tpu_custom_call.1} parent=0
    _
  %s17 = ssub.s32 1, %s15
  %s18 = scalar_select 0, %s17, %s15
  %s20 = sshll.u32 %s0, 4
  %s21 = int_to_ptr.hbm [resolvable:$true] %s20
  %23 = dma.hbm_to_smem %s21, 16, [#allocation6], [#allocation5]
  %25 = dma.done [#allocation5], 16
  %26 = sfence
  $region1: #{tpu_custom_call.1} parent=0
    #allocation7 [shape = 'u8[1024]{0}', space=vmem, size = 0x400, scoped, tag = 'input window, operand 3']
    #allocation8 [shape = 's32[2]{0}', space=sflag, size = 0x8, scoped, tag = 'scoped memory for tpu_custom_call.1']
    #allocation9 [shape = 's32[2]{0}', space=sflag, size = 0x8, scoped, tag = 'scoped memory for tpu_custom_call.1']
    #allocation10 [shape = 'u8[16384]{0}', space=vmem, size = 0x4000, scoped, tag = 'input window, operand 4']
    #allocation11 [shape = 's32[2]{0}', space=sflag, size = 0x8, scoped, tag = 'scoped memory for tpu_custom_call.1']
    #allocation12 [shape = 'u8[1024]{0}', space=vmem, size = 0x400, scoped, tag = 'input window, operand 7']
    #allocation13 [shape = 'u8[147456]{0}', space=vmem, size = 0x24000, scoped, tag = 'input window, operand 8']
    #allocation14 [shape = 's32[2]{0}', space=sflag, size = 0x8, scoped, tag = 'scoped memory for tpu_custom_call.1']
    #allocation15 [shape = 'u8[1024]{0}', space=vmem, size = 0x400, scoped, tag = 'input window, operand 13']
    #allocation16 [shape = 'u8[32768]{0}', space=vmem, size = 0x8000, scoped, tag = 'output window, operand 0']
    %27 = vsyncpa [#allocation8], 0
    %s28 = scalar_lea.sflag [#allocation8], 1
    %29 = vsyncpa %s28, 0
    %30 = vsyncpa [#allocation11], 0
    %s31 = scalar_lea.sflag [#allocation11], 1
    %32 = vsyncpa %s31, 0
    %33 = vsyncpa [#allocation14], 0
    %s34 = scalar_lea.sflag [#allocation14], 1
    %35 = vsyncpa %s34, 0
    %36 = vsyncpa [#allocation9], 0
    %s37 = scalar_lea.sflag [#allocation9], 1
    %38 = vsyncpa %s37, 0
    loop: start=0, step=1, limit=6
    $region2: #{tpu_custom_call.1} parent=1 // loop_pre_header
      _
    $region3: #{tpu_custom_call.1} parent=1 // loop_header
      %s40 = sphi 0, %s44
      %p41 = scmp.ge.s32.totalorder %s40, 6
      %s47 = sphi 0, %s59
      %s48 = sphi 0, %s55
      %s49 = sphi 0, %s47
      %s50 = sphi 0, %s48
      %s51 = sphi 0, %s49
      %s52 = sphi 0, %s50
      %s62 = sphi 0, %s64
      %s65 = sphi 0, %s62
      %s66 = sphi 0, %s65
      %s82 = sphi 0, %s66
      %s88 = sphi 0, %s90
      %s91 = sphi 0, %s88
      %s92 = sphi 0, %s91
      %s108 = sphi 0, %s92
      %s114 = sphi 0, %s116
      %s117 = sphi 0, %s114
      %s118 = sphi 0, %s117
      %s134 = sphi 0, %s118
      %s140 = sphi 0, %s142
      %s143 = sphi 0, %s140
      %s144 = sphi 0, %s143
      %s160 = sphi 0, %s144
      %s166 = sphi 0, %s168
      %s169 = sphi 0, %s166
      %s170 = sphi 0, %s169
      %s186 = sphi 0, %s170
      %s192 = sphi 0, %s194
      %s195 = sphi 0, %s192
      %s196 = sphi 0, %s195
      %s212 = sphi 0, %s196
      %s218 = sphi 0, %s220
      %s221 = sphi 0, %s218
      %s222 = sphi 0, %s221
      %s238 = sphi 0, %s222
      %s244 = sphi 0, %s246
      %s247 = sphi 0, %s244
      %s248 = sphi 0, %s247
      %s264 = sphi 0, %s248
      %s270 = sphi 0, %s272
      %s273 = sphi 0, %s270
      %s274 = sphi 0, %s273
      %s290 = sphi 0, %s274
      %s296 = sphi 0, %s298
      %s299 = sphi 0, %s296
      %s300 = sphi 0, %s299
      %s316 = sphi 0, %s300
      %s322 = sphi 0, %s324
      %s325 = sphi 0, %s322
      %s326 = sphi 0, %s325
      %s342 = sphi 0, %s326
      %s348 = sphi 0, %s350
      %s351 = sphi 0, %s348
      %s352 = sphi 0, %s351
      %s368 = sphi 0, %s352
      %s374 = sphi 0, %s376
      %s377 = sphi 0, %s374
      %s378 = sphi 0, %s377
      %s394 = sphi 0, %s378
      %s400 = sphi 0, %s402
      %s403 = sphi 0, %s400
      %s404 = sphi 0, %s403
      %s420 = sphi 0, %s404
    $region4: #{tpu_custom_call.1} parent=1 // loop_header_branch
      %43 = sbr.rel (%p41) target = $region8
    $region5: #{tpu_custom_call.1} parent=1 // loop_body
      %s45 = ssub.s32 %s40, 1
      %s46 = ssub.s32 %s40, 2
      %s53 = sadd.s32 1, %s48
      %p54 = scmp.ge.s32.totalorder %s53, 2
      %s55 = scalar_select %p54, 0, %s53
      %s56 = sadd.s32 1, %s47
      %s57 = scalar_select %p54, %s56, %s47
      %p58 = scmp.ge.s32.totalorder %s57, 2
      %s59 = scalar_select %p58, 0, %s57
      %s60 = ssub.s32 %s47, %s59
      %p61 = scmp.eq.s32.totalorder %s60, 0
      %s63 = sadd.s32 %s62, 1
      %s64 = scalar_select %p61, %s62, %s63
      %p67 = pneg %p61
      %p68 = scmp.eq.s32.totalorder %s40, 3
      %p69 = por %p67, %p68
      %p70 = scmp.ne.s32.totalorder %s62, %s65
      %p71 = scmp.eq.s32.totalorder %s40, 0
      %p72 = por %p70, %p71
      %p73 = scmp.ne.s32.totalorder %s62, %s65
      %p74 = scmp.eq.s32.totalorder %s45, 3
      %p75 = por %p73, %p74
      %p76 = scmp.ne.s32.totalorder %s65, %s66
      %p77 = scmp.eq.s32.totalorder %s45, 0
      %p78 = por %p76, %p77
      %p79 = scmp.ne.s32.totalorder %s65, %s66
      %p80 = scmp.eq.s32.totalorder %s46, 3
      %p81 = por %p79, %p80
      %p83 = scmp.ne.s32.totalorder %s66, %s82
      %p84 = scmp.eq.s32.totalorder %s46, 0
      %p85 = por %p83, %p84
      %s86 = ssub.s32 %s48, %s55
      %p87 = scmp.eq.s32.totalorder %s86, 0
      %s89 = sadd.s32 %s88, 1
      %s90 = scalar_select %p87, %s88, %s89
      %p93 = pneg %p87
      %p94 = scmp.eq.s32.totalorder %s40, 3
      %p95 = por %p93, %p94
      %p96 = scmp.ne.s32.totalorder %s88, %s91
      %p97 = scmp.eq.s32.totalorder %s40, 0
      %p98 = por %p96, %p97
      %p99 = scmp.ne.s32.totalorder %s88, %s91
      %p100 = scmp.eq.s32.totalorder %s45, 3
      %p101 = por %p99, %p100
      %p102 = scmp.ne.s32.totalorder %s91, %s92
      %p103 = scmp.eq.s32.totalorder %s45, 0
      %p104 = por %p102, %p103
      %p105 = scmp.ne.s32.totalorder %s91, %s92
      %p106 = scmp.eq.s32.totalorder %s46, 3
      %p107 = por %p105, %p106
      %p109 = scmp.ne.s32.totalorder %s92, %s108
      %p110 = scmp.eq.s32.totalorder %s46, 0
      %p111 = por %p109, %p110
      %s112 = ssub.s32 %s48, %s55
      %p113 = scmp.eq.s32.totalorder %s112, 0
      %s115 = sadd.s32 %s114, 1
      %s116 = scalar_select %p113, %s114, %s115
      %p119 = pneg %p113
      %p120 = scmp.eq.s32.totalorder %s40, 3
      %p121 = por %p119, %p120
      %p122 = scmp.ne.s32.totalorder %s114, %s117
      %p123 = scmp.eq.s32.totalorder %s40, 0
      %p124 = por %p122, %p123
      %p125 = scmp.ne.s32.totalorder %s114, %s117
      %p126 = scmp.eq.s32.totalorder %s45, 3
      %p127 = por %p125, %p126
      %p128 = scmp.ne.s32.totalorder %s117, %s118
      %p129 = scmp.eq.s32.totalorder %s45, 0
      %p130 = por %p128, %p129
      %p131 = scmp.ne.s32.totalorder %s117, %s118
      %p132 = scmp.eq.s32.totalorder %s46, 3
      %p133 = por %p131, %p132
      %p135 = scmp.ne.s32.totalorder %s118, %s134
      %p136 = scmp.eq.s32.totalorder %s46, 0
      %p137 = por %p135, %p136
      %s138 = ssub.s32 %s48, %s55
      %p139 = scmp.eq.s32.totalorder %s138, 0
      %s141 = sadd.s32 %s140, 1
      %s142 = scalar_select %p139, %s140, %s141
      %p145 = pneg %p139
      %p146 = scmp.eq.s32.totalorder %s40, 3
      %p147 = por %p145, %p146
      %p148 = scmp.ne.s32.totalorder %s140, %s143
      %p149 = scmp.eq.s32.totalorder %s40, 0
      %p150 = por %p148, %p149
      %p151 = scmp.ne.s32.totalorder %s140, %s143
      %p152 = scmp.eq.s32.totalorder %s45, 3
      %p153 = por %p151, %p152
      %p154 = scmp.ne.s32.totalorder %s143, %s144
      %p155 = scmp.eq.s32.totalorder %s45, 0
      %p156 = por %p154, %p155
      %p157 = scmp.ne.s32.totalorder %s143, %s144
      %p158 = scmp.eq.s32.totalorder %s46, 3
      %p159 = por %p157, %p158
      %p161 = scmp.ne.s32.totalorder %s144, %s160
      %p162 = scmp.eq.s32.totalorder %s46, 0
      %p163 = por %p161, %p162
      %s164 = ssub.s32 %s48, %s55
      %p165 = scmp.eq.s32.totalorder %s164, 0
      %s167 = sadd.s32 %s166, 1
      %s168 = scalar_select %p165, %s166, %s167
      %p171 = pneg %p165
      %p172 = scmp.eq.s32.totalorder %s40, 3
      %p173 = por %p171, %p172
      %p174 = scmp.ne.s32.totalorder %s166, %s169
      %p175 = scmp.eq.s32.totalorder %s40, 0
      %p176 = por %p174, %p175
      %p177 = scmp.ne.s32.totalorder %s166, %s169
      %p178 = scmp.eq.s32.totalorder %s45, 3
      %p179 = por %p177, %p178
      %p180 = scmp.ne.s32.totalorder %s169, %s170
      %p181 = scmp.eq.s32.totalorder %s45, 0
      %p182 = por %p180, %p181
      %p183 = scmp.ne.s32.totalorder %s169, %s170
      %p184 = scmp.eq.s32.totalorder %s46, 3
      %p185 = por %p183, %p184
      %p187 = scmp.ne.s32.totalorder %s170, %s186
      %p188 = scmp.eq.s32.totalorder %s46, 0
      %p189 = por %p187, %p188
      %s190 = ssub.s32 %s48, %s55
      %p191 = scmp.eq.s32.totalorder %s190, 0
      %s193 = sadd.s32 %s192, 1
      %s194 = scalar_select %p191, %s192, %s193
      %p197 = pneg %p191
      %p198 = scmp.eq.s32.totalorder %s40, 3
      %p199 = por %p197, %p198
      %p200 = scmp.ne.s32.totalorder %s192, %s195
      %p201 = scmp.eq.s32.totalorder %s40, 0
      %p202 = por %p200, %p201
      %p203 = scmp.ne.s32.totalorder %s192, %s195
      %p204 = scmp.eq.s32.totalorder %s45, 3
      %p205 = por %p203, %p204
      %p206 = scmp.ne.s32.totalorder %s195, %s196
      %p207 = scmp.eq.s32.totalorder %s45, 0
      %p208 = por %p206, %p207
      %p209 = scmp.ne.s32.totalorder %s195, %s196
      %p210 = scmp.eq.s32.totalorder %s46, 3
      %p211 = por %p209, %p210
      %p213 = scmp.ne.s32.totalorder %s196, %s212
      %p214 = scmp.eq.s32.totalorder %s46, 0
      %p215 = por %p213, %p214
      %s216 = ssub.s32 %s48, %s55
      %p217 = scmp.eq.s32.totalorder %s216, 0
      %s219 = sadd.s32 %s218, 1
      %s220 = scalar_select %p217, %s218, %s219
      %p223 = pneg %p217
      %p224 = scmp.eq.s32.totalorder %s40, 3
      %p225 = por %p223, %p224
      %p226 = scmp.ne.s32.totalorder %s218, %s221
      %p227 = scmp.eq.s32.totalorder %s40, 0
      %p228 = por %p226, %p227
      %p229 = scmp.ne.s32.totalorder %s218, %s221
      %p230 = scmp.eq.s32.totalorder %s45, 3
      %p231 = por %p229, %p230
      %p232 = scmp.ne.s32.totalorder %s221, %s222
      %p233 = scmp.eq.s32.totalorder %s45, 0
      %p234 = por %p232, %p233
      %p235 = scmp.ne.s32.totalorder %s221, %s222
      %p236 = scmp.eq.s32.totalorder %s46, 3
      %p237 = por %p235, %p236
      %p239 = scmp.ne.s32.totalorder %s222, %s238
      %p240 = scmp.eq.s32.totalorder %s46, 0
      %p241 = por %p239, %p240
      %s242 = ssub.s32 %s48, %s55
      %p243 = scmp.eq.s32.totalorder %s242, 0
      %s245 = sadd.s32 %s244, 1
      %s246 = scalar_select %p243, %s244, %s245
      %p249 = pneg %p243
      %p250 = scmp.eq.s32.totalorder %s40, 3
      %p251 = por %p249, %p250
      %p252 = scmp.ne.s32.totalorder %s244, %s247
      %p253 = scmp.eq.s32.totalorder %s40, 0
      %p254 = por %p252, %p253
      %p255 = scmp.ne.s32.totalorder %s244, %s247
      %p256 = scmp.eq.s32.totalorder %s45, 3
      %p257 = por %p255, %p256
      %p258 = scmp.ne.s32.totalorder %s247, %s248
      %p259 = scmp.eq.s32.totalorder %s45, 0
      %p260 = por %p258, %p259
      %p261 = scmp.ne.s32.totalorder %s247, %s248
      %p262 = scmp.eq.s32.totalorder %s46, 3
      %p263 = por %p261, %p262
      %p265 = scmp.ne.s32.totalorder %s248, %s264
      %p266 = scmp.eq.s32.totalorder %s46, 0
      %p267 = por %p265, %p266
      %s268 = ssub.s32 %s48, %s55
      %p269 = scmp.eq.s32.totalorder %s268, 0
      %s271 = sadd.s32 %s270, 1
      %s272 = scalar_select %p269, %s270, %s271
      %p275 = pneg %p269
      %p276 = scmp.eq.s32.totalorder %s40, 3
      %p277 = por %p275, %p276
      %p278 = scmp.ne.s32.totalorder %s270, %s273
      %p279 = scmp.eq.s32.totalorder %s40, 0
      %p280 = por %p278, %p279
      %p281 = scmp.ne.s32.totalorder %s270, %s273
      %p282 = scmp.eq.s32.totalorder %s45, 3
      %p283 = por %p281, %p282
      %p284 = scmp.ne.s32.totalorder %s273, %s274
      %p285 = scmp.eq.s32.totalorder %s45, 0
      %p286 = por %p284, %p285
      %p287 = scmp.ne.s32.totalorder %s273, %s274
      %p288 = scmp.eq.s32.totalorder %s46, 3
      %p289 = por %p287, %p288
      %p291 = scmp.ne.s32.totalorder %s274, %s290
      %p292 = scmp.eq.s32.totalorder %s46, 0
      %p293 = por %p291, %p292
      %s294 = ssub.s32 %s48, %s55
      %p295 = scmp.eq.s32.totalorder %s294, 0
      %s297 = sadd.s32 %s296, 1
      %s298 = scalar_select %p295, %s296, %s297
      %p301 = pneg %p295
      %p302 = scmp.eq.s32.totalorder %s40, 3
      %p303 = por %p301, %p302
      %p304 = scmp.ne.s32.totalorder %s296, %s299
      %p305 = scmp.eq.s32.totalorder %s40, 0
      %p306 = por %p304, %p305
      %p307 = scmp.ne.s32.totalorder %s296, %s299
      %p308 = scmp.eq.s32.totalorder %s45, 3
      %p309 = por %p307, %p308
      %p310 = scmp.ne.s32.totalorder %s299, %s300
      %p311 = scmp.eq.s32.totalorder %s45, 0
      %p312 = por %p310, %p311
      %p313 = scmp.ne.s32.totalorder %s299, %s300
      %p314 = scmp.eq.s32.totalorder %s46, 3
      %p315 = por %p313, %p314
      %p317 = scmp.ne.s32.totalorder %s300, %s316
      %p318 = scmp.eq.s32.totalorder %s46, 0
      %p319 = por %p317, %p318
      %s320 = ssub.s32 %s48, %s55
      %p321 = scmp.eq.s32.totalorder %s320, 0
      %s323 = sadd.s32 %s322, 1
      %s324 = scalar_select %p321, %s322, %s323
      %p327 = pneg %p321
      %p328 = scmp.eq.s32.totalorder %s40, 3
      %p329 = por %p327, %p328
      %p330 = scmp.ne.s32.totalorder %s322, %s325
      %p331 = scmp.eq.s32.totalorder %s40, 0
      %p332 = por %p330, %p331
      %p333 = scmp.ne.s32.totalorder %s322, %s325
      %p334 = scmp.eq.s32.totalorder %s45, 3
      %p335 = por %p333, %p334
      %p336 = scmp.ne.s32.totalorder %s325, %s326
      %p337 = scmp.eq.s32.totalorder %s45, 0
      %p338 = por %p336, %p337
      %p339 = scmp.ne.s32.totalorder %s325, %s326
      %p340 = scmp.eq.s32.totalorder %s46, 3
      %p341 = por %p339, %p340
      %p343 = scmp.ne.s32.totalorder %s326, %s342
      %p344 = scmp.eq.s32.totalorder %s46, 0
      %p345 = por %p343, %p344
      %s346 = ssub.s32 %s48, %s55
      %p347 = scmp.eq.s32.totalorder %s346, 0
      %s349 = sadd.s32 %s348, 1
      %s350 = scalar_select %p347, %s348, %s349
      %p353 = pneg %p347
      %p354 = scmp.eq.s32.totalorder %s40, 3
      %p355 = por %p353, %p354
      %p356 = scmp.ne.s32.totalorder %s348, %s351
      %p357 = scmp.eq.s32.totalorder %s40, 0
      %p358 = por %p356, %p357
      %p359 = scmp.ne.s32.totalorder %s348, %s351
      %p360 = scmp.eq.s32.totalorder %s45, 3
      %p361 = por %p359, %p360
      %p362 = scmp.ne.s32.totalorder %s351, %s352
      %p363 = scmp.eq.s32.totalorder %s45, 0
      %p364 = por %p362, %p363
      %p365 = scmp.ne.s32.totalorder %s351, %s352
      %p366 = scmp.eq.s32.totalorder %s46, 3
      %p367 = por %p365, %p366
      %p369 = scmp.ne.s32.totalorder %s352, %s368
      %p370 = scmp.eq.s32.totalorder %s46, 0
      %p371 = por %p369, %p370
      %s372 = ssub.s32 %s48, %s55
      %p373 = scmp.eq.s32.totalorder %s372, 0
      %s375 = sadd.s32 %s374, 1
      %s376 = scalar_select %p373, %s374, %s375
      %p379 = pneg %p373
      %p380 = scmp.eq.s32.totalorder %s40, 3
      %p381 = por %p379, %p380
      %p382 = scmp.ne.s32.totalorder %s374, %s377
      %p383 = scmp.eq.s32.totalorder %s40, 0
      %p384 = por %p382, %p383
      %p385 = scmp.ne.s32.totalorder %s374, %s377
      %p386 = scmp.eq.s32.totalorder %s45, 3
      %p387 = por %p385, %p386
      %p388 = scmp.ne.s32.totalorder %s377, %s378
      %p389 = scmp.eq.s32.totalorder %s45, 0
      %p390 = por %p388, %p389
      %p391 = scmp.ne.s32.totalorder %s377, %s378
      %p392 = scmp.eq.s32.totalorder %s46, 3
      %p393 = por %p391, %p392
      %p395 = scmp.ne.s32.totalorder %s378, %s394
      %p396 = scmp.eq.s32.totalorder %s46, 0
      %p397 = por %p395, %p396
      %s398 = ssub.s32 %s47, %s59
      %p399 = scmp.eq.s32.totalorder %s398, 0
      %s401 = sadd.s32 %s400, 1
      %s402 = scalar_select %p399, %s400, %s401
      %p405 = pneg %p399
      %p406 = scmp.eq.s32.totalorder %s40, 3
      %p407 = por %p405, %p406
      %p408 = scmp.ne.s32.totalorder %s400, %s403
      %p409 = scmp.eq.s32.totalorder %s40, 0
      %p410 = por %p408, %p409
      %p411 = scmp.ne.s32.totalorder %s400, %s403
      %p412 = scmp.eq.s32.totalorder %s45, 3
      %p413 = por %p411, %p412
      %p414 = scmp.ne.s32.totalorder %s403, %s404
      %p415 = scmp.eq.s32.totalorder %s45, 0
      %p416 = por %p414, %p415
      %p417 = scmp.ne.s32.totalorder %s403, %s404
      %p418 = scmp.eq.s32.totalorder %s46, 3
      %p419 = por %p417, %p418
      %p421 = scmp.ne.s32.totalorder %s404, %s420
      %p422 = scmp.eq.s32.totalorder %s46, 0
      %p423 = por %p421, %p422
      %p424 = scmp.le.s32.totalorder 1, %s40
      %p425 = scmp.lt.s32.totalorder %s40, 5
      %p426 = pnand %p424, %p425
      %p427 = pneg %p426
      // Predicated region
      $region9: #{tpu_custom_call.1} parent=5 // pred_check
        _
      $region10: #{tpu_custom_call.1} parent=5 // pred_check_branch
        %429 = sbr.rel (%p426) target = $region12
      $region11: #{tpu_custom_call.1} parent=5 // pred_region
        %s430 = ssub.s32 %s40, 1
      $region12: #{tpu_custom_call.1} parent=5 // pred_fallthru
        _
      %p431 = scmp.lt.s32.totalorder %s40, 4
      // Predicated region
      $region13: #{tpu_custom_call.1} parent=5 // pred_check
        %p432 = pneg %p431
      $region14: #{tpu_custom_call.1} parent=5 // pred_check_branch
        %434 = sbr.rel (%p432) target = $region16
      $region15: #{tpu_custom_call.1} parent=5 // pred_region
        // Predicated region
        $region17: #{tpu_custom_call.1} parent=15 // pred_check
          %p435 = pneg %p72
        $region18: #{tpu_custom_call.1} parent=15 // pred_check_branch
          %437 = sbr.rel (%p435) target = $region20
        $region19: #{tpu_custom_call.1} parent=15 // pred_region
          %p438 = scmp.lt.s32.totalorder %s47, 1
          %s439 = scalar_select %p438, %s47, 1
          %s440 = smul.addr %s439, 4
          %s441 = smul.addr %s440, 8
          %s442 = scalar_lea.vmem %s1, %s441
        $region20: #{tpu_custom_call.1} parent=15 // pred_fallthru
          _
        // Predicated region
        $region21: #{tpu_custom_call.1} parent=15 // pred_check
          %p443 = pneg %p98
        $region22: #{tpu_custom_call.1} parent=15 // pred_check_branch
          %445 = sbr.rel (%p443) target = $region24
        $region23: #{tpu_custom_call.1} parent=15 // pred_region
          %p446 = scmp.lt.s32.totalorder %s48, 1
          %s447 = scalar_select %p446, %s48, 1
          %s448 = smul.addr %s447, 4
          %s449 = smul.addr %s448, 4
          %s450 = scalar_lea.vmem %s2, %s449
        $region24: #{tpu_custom_call.1} parent=15 // pred_fallthru
          _
        // Predicated region
        $region25: #{tpu_custom_call.1} parent=15 // pred_check
          %p451 = pneg %p124
        $region26: #{tpu_custom_call.1} parent=15 // pred_check_branch
          %453 = sbr.rel (%p451) target = $region28
        $region27: #{tpu_custom_call.1} parent=15 // pred_region
          %s454 = sand.u32 %s114, 1
          %s455 = scalar_lea.sflag [#allocation8], %s454
          %s456 = sand.u32 %s114, 1
          %s457 = scalar_lea.vmem [#allocation7], %s456
          %459 = vsyncadd %s455, 0
          %s460 = scalar_lea.hbm %s3, %s48
          %s462 = sshll.u32 %s460, 4
          %s463 = int_to_ptr.hbm [resolvable:$true] %s462
          %s464 = sshll.u32 %s457, 4
          %s465 = int_to_ptr.vmem [resolvable:$true] %s464
          %467 = dma.hbm_to_vmem [thread:$0]  %s463, 16, %s465, %s455
        $region28: #{tpu_custom_call.1} parent=15 // pred_fallthru
          _
        // Predicated region
        $region29: #{tpu_custom_call.1} parent=15 // pred_check
          %p468 = pneg %p150
        $region30: #{tpu_custom_call.1} parent=15 // pred_check_branch
          %470 = sbr.rel (%p468) target = $region32
        $region31: #{tpu_custom_call.1} parent=15 // pred_region
          %s471 = sand.u32 %s40, 1
          %s472 = scalar_lea.sflag [#allocation11], %s471
          %s473 = sand.u32 %s140, 1
          %s474 = smul.addr %s473, 16
          %s475 = scalar_lea.vmem [#allocation10], %s474
          %477 = vsyncadd %s472, 0
          %s478 = smul.addr %s48, 4
          %s479 = smul.addr %s478, 4
          %s480 = scalar_lea.hbm %s4, %s479
          %s481 = sshll.u32 %s480, 4
          %s482 = int_to_ptr.hbm [resolvable:$true] %s481
          %s483 = sshll.u32 %s475, 4
          %s484 = int_to_ptr.vmem [resolvable:$true] %s483
          %489 = dma.hbm_to_vmem [thread:$0]  %s482, 256, %s484, %s472, 64, 64, 4
        $region32: #{tpu_custom_call.1} parent=15 // pred_fallthru
          _
        // Predicated region
        $region33: #{tpu_custom_call.1} parent=15 // pred_check
          %p490 = pneg %p176
        $region34: #{tpu_custom_call.1} parent=15 // pred_check_branch
          %492 = sbr.rel (%p490) target = $region36
        $region35: #{tpu_custom_call.1} parent=15 // pred_region
          %p493 = scmp.lt.s32.totalorder %s48, 1
          %s494 = scalar_select %p493, %s48, 1
          %s495 = scalar_lea.vmem %s5, %s494
        $region36: #{tpu_custom_call.1} parent=15 // pred_fallthru
          _
        // Predicated region
        $region37: #{tpu_custom_call.1} parent=15 // pred_check
          %p496 = pneg %p202
        $region38: #{tpu_custom_call.1} parent=15 // pred_check_branch
          %498 = sbr.rel (%p496) target = $region40
        $region39: #{tpu_custom_call.1} parent=15 // pred_region
          %p499 = scmp.lt.s32.totalorder %s48, 1
          %s500 = scalar_select %p499, %s48, 1
          %s501 = scalar_lea.vmem %s6, %s500
        $region40: #{tpu_custom_call.1} parent=15 // pred_fallthru
          _
        // Predicated region
        $region41: #{tpu_custom_call.1} parent=15 // pred_check
          %p502 = pneg %p228
        $region42: #{tpu_custom_call.1} parent=15 // pred_check_branch
          %504 = sbr.rel (%p502) target = $region44
        $region43: #{tpu_custom_call.1} parent=15 // pred_region
          %s505 = sand.u32 %s40, 1
          %s506 = scalar_lea.sflag [#allocation11], %s505
          %s507 = sand.u32 %s218, 1
          %s508 = scalar_lea.vmem [#allocation12], %s507
          %510 = vsyncadd %s506, 0
          %s511 = scalar_lea.hbm %s7, %s48
          %s513 = sshll.u32 %s511, 4
          %s514 = int_to_ptr.hbm [resolvable:$true] %s513
          %s515 = sshll.u32 %s508, 4
          %s516 = int_to_ptr.vmem [resolvable:$true] %s515
          %518 = dma.hbm_to_vmem [thread:$0]  %s514, 16, %s516, %s506
        $region44: #{tpu_custom_call.1} parent=15 // pred_fallthru
          _
        // Predicated region
        $region45: #{tpu_custom_call.1} parent=15 // pred_check
          %p519 = pneg %p254
        $region46: #{tpu_custom_call.1} parent=15 // pred_check_branch
          %521 = sbr.rel (%p519) target = $region48
        $region47: #{tpu_custom_call.1} parent=15 // pred_region
          %s522 = sand.u32 %s40, 1
          %s523 = scalar_lea.sflag [#allocation14], %s522
          %s524 = sand.u32 %s244, 1
          %s525 = smul.addr %s524, 144
          %s526 = scalar_lea.vmem [#allocation13], %s525
          %528 = vsyncadd %s523, 0
          %s529 = smul.addr %s48, 36
          %s530 = smul.addr %s529, 4
          %s531 = scalar_lea.hbm %s8, %s530
          %s532 = sshll.u32 %s531, 4
          %s533 = int_to_ptr.hbm [resolvable:$true] %s532
          %s534 = sshll.u32 %s526, 4
          %s535 = int_to_ptr.vmem [resolvable:$true] %s534
          %540 = dma.hbm_to_vmem [thread:$0]  %s533, 2304, %s535, %s523, 64, 64, 4
        $region48: #{tpu_custom_call.1} parent=15 // pred_fallthru
          _
        // Predicated region
        $region49: #{tpu_custom_call.1} parent=15 // pred_check
          %p541 = pneg %p280
        $region50: #{tpu_custom_call.1} parent=15 // pred_check_branch
          %543 = sbr.rel (%p541) target = $region52
        $region51: #{tpu_custom_call.1} parent=15 // pred_region
          %p544 = scmp.lt.s32.totalorder %s48, 1
          %s545 = scalar_select %p544, %s48, 1
          %s546 = scalar_lea.vmem %s9, %s545
        $region52: #{tpu_custom_call.1} parent=15 // pred_fallthru
          _
        // Predicated region
        $region53: #{tpu_custom_call.1} parent=15 // pred_check
          %p547 = pneg %p306
        $region54: #{tpu_custom_call.1} parent=15 // pred_check_branch
          %549 = sbr.rel (%p547) target = $region56
        $region55: #{tpu_custom_call.1} parent=15 // pred_region
          %p550 = scmp.lt.s32.totalorder %s48, 1
          %s551 = scalar_select %p550, %s48, 1
          %s552 = smul.addr %s551, 8
          %s553 = smul.addr %s552, 4
          %s554 = scalar_lea.vmem %s10, %s553
        $region56: #{tpu_custom_call.1} parent=15 // pred_fallthru
          _
        // Predicated region
        $region57: #{tpu_custom_call.1} parent=15 // pred_check
          %p555 = pneg %p332
        $region58: #{tpu_custom_call.1} parent=15 // pred_check_branch
          %557 = sbr.rel (%p555) target = $region60
        $region59: #{tpu_custom_call.1} parent=15 // pred_region
          %p558 = scmp.lt.s32.totalorder %s48, 1
          %s559 = scalar_select %p558, %s48, 1
          %s560 = scalar_lea.vmem %s11, %s559
        $region60: #{tpu_custom_call.1} parent=15 // pred_fallthru
          _
        // Predicated region
        $region61: #{tpu_custom_call.1} parent=15 // pred_check
          %p561 = pneg %p358
        $region62: #{tpu_custom_call.1} parent=15 // pred_check_branch
          %563 = sbr.rel (%p561) target = $region64
        $region63: #{tpu_custom_call.1} parent=15 // pred_region
          %p564 = scmp.lt.s32.totalorder %s48, 1
          %s565 = scalar_select %p564, %s48, 1
          %s566 = scalar_lea.vmem %s12, %s565
        $region64: #{tpu_custom_call.1} parent=15 // pred_fallthru
          _
        // Predicated region
        $region65: #{tpu_custom_call.1} parent=15 // pred_check
          %p567 = pneg %p384
        $region66: #{tpu_custom_call.1} parent=15 // pred_check_branch
          %569 = sbr.rel (%p567) target = $region68
        $region67: #{tpu_custom_call.1} parent=15 // pred_region
          %s570 = sand.u32 %s40, 1
          %s571 = scalar_lea.sflag [#allocation14], %s570
          %s572 = sand.u32 %s374, 1
          %s573 = scalar_lea.vmem [#allocation15], %s572
          %575 = vsyncadd %s571, 0
          %s576 = scalar_lea.hbm %s13, %s48
          %s578 = sshll.u32 %s576, 4
          %s579 = int_to_ptr.hbm [resolvable:$true] %s578
          %s580 = sshll.u32 %s573, 4
          %s581 = int_to_ptr.vmem [resolvable:$true] %s580
          %583 = dma.hbm_to_vmem [thread:$0]  %s579, 16, %s581, %s571
        $region68: #{tpu_custom_call.1} parent=15 // pred_fallthru
          _
      $region16: #{tpu_custom_call.1} parent=5 // pred_fallthru
        _
      %p584 = scmp.le.s32.totalorder 1, %s40
      %p585 = scmp.lt.s32.totalorder %s40, 5
      %p586 = pnand %p584, %p585
      %p587 = pneg %p586
      // Predicated region
      $region69: #{tpu_custom_call.1} parent=5 // pred_check
        _
      $region70: #{tpu_custom_call.1} parent=5 // pred_check_branch
        %589 = sbr.rel (%p586) target = $region72
      $region71: #{tpu_custom_call.1} parent=5 // pred_region
        %s590 = ssub.s32 %s40, 1
        %s591 = sand.u32 %s117, 1
        %s592 = scalar_lea.sflag [#allocation8], %s591
        %s593 = sand.u32 %s117, 1
        %s594 = scalar_lea.vmem [#allocation7], %s593
        // Predicated region
        $region73: #{tpu_custom_call.1} parent=71 // pred_check
          %p595 = pneg %p130
        $region74: #{tpu_custom_call.1} parent=71 // pred_check_branch
          %597 = sbr.rel (%p595) target = $region76
        $region75: #{tpu_custom_call.1} parent=71 // pred_region
          %599 = dma.done %s592, 16
        $region76: #{tpu_custom_call.1} parent=71 // pred_fallthru
          _
        %s600 = sand.u32 %s45, 1
        %s601 = scalar_lea.sflag [#allocation11], %s600
        %s602 = sand.u32 %s143, 1
        %s603 = smul.addr %s602, 16
        %s604 = scalar_lea.vmem [#allocation10], %s603
        // Predicated region
        $region77: #{tpu_custom_call.1} parent=71 // pred_check
          %p605 = pneg %p156
        $region78: #{tpu_custom_call.1} parent=71 // pred_check_branch
          %607 = sbr.rel (%p605) target = $region80
        $region79: #{tpu_custom_call.1} parent=71 // pred_region
          %609 = dma.done %s601, 256
        $region80: #{tpu_custom_call.1} parent=71 // pred_fallthru
          _
        %s610 = sand.u32 %s45, 1
        %s611 = scalar_lea.sflag [#allocation11], %s610
        %s612 = sand.u32 %s221, 1
        %s613 = scalar_lea.vmem [#allocation12], %s612
        // Predicated region
        $region81: #{tpu_custom_call.1} parent=71 // pred_check
          %p614 = pneg %p234
        $region82: #{tpu_custom_call.1} parent=71 // pred_check_branch
          %616 = sbr.rel (%p614) target = $region84
        $region83: #{tpu_custom_call.1} parent=71 // pred_region
          %618 = dma.done %s611, 16
        $region84: #{tpu_custom_call.1} parent=71 // pred_fallthru
          _
        %s619 = sand.u32 %s45, 1
        %s620 = scalar_lea.sflag [#allocation14], %s619
        %s621 = sand.u32 %s247, 1
        %s622 = smul.addr %s621, 144
        %s623 = scalar_lea.vmem [#allocation13], %s622
        // Predicated region
        $region85: #{tpu_custom_call.1} parent=71 // pred_check
          %p624 = pneg %p260
        $region86: #{tpu_custom_call.1} parent=71 // pred_check_branch
          %626 = sbr.rel (%p624) target = $region88
        $region87: #{tpu_custom_call.1} parent=71 // pred_region
          %628 = dma.done %s620, 2304
        $region88: #{tpu_custom_call.1} parent=71 // pred_fallthru
          _
        %s629 = sand.u32 %s45, 1
        %s630 = scalar_lea.sflag [#allocation14], %s629
        %s631 = sand.u32 %s377, 1
        %s632 = scalar_lea.vmem [#allocation15], %s631
        // Predicated region
        $region89: #{tpu_custom_call.1} parent=71 // pred_check
          %p633 = pneg %p390
        $region90: #{tpu_custom_call.1} parent=71 // pred_check_branch
          %635 = sbr.rel (%p633) target = $region92
        $region91: #{tpu_custom_call.1} parent=71 // pred_region
          %637 = dma.done %s630, 16
        $region92: #{tpu_custom_call.1} parent=71 // pred_fallthru
          _
        %p638 = scmp.lt.s32.totalorder %s49, 1
        %s639 = scalar_select %p638, %s49, 1
        %s640 = smul.addr %s639, 4
        %s641 = smul.addr %s640, 8
        %s642 = scalar_lea.vmem %s1, %s641
        %p643 = pneg %p78
        %p644 = pneg %p75
        %p645 = scmp.lt.s32.totalorder %s50, 1
        %s646 = scalar_select %p645, %s50, 1
        %s647 = smul.addr %s646, 4
        %s648 = smul.addr %s647, 4
        %s649 = scalar_lea.vmem %s2, %s648
        %p650 = pneg %p104
        %p651 = pneg %p101
        %s652 = sand.u32 %s117, 1
        %s653 = scalar_lea.sflag [#allocation8], %s652
        %s654 = sand.u32 %s117, 1
        %s655 = scalar_lea.vmem [#allocation7], %s654
        %p656 = pneg %p130
        %p657 = pneg %p127
        %s658 = sand.u32 %s45, 1
        %s659 = scalar_lea.sflag [#allocation11], %s658
        %s660 = sand.u32 %s143, 1
        %s661 = smul.addr %s660, 16
        %s662 = scalar_lea.vmem [#allocation10], %s661
        %p663 = pneg %p156
        %p664 = pneg %p153
        %p665 = scmp.lt.s32.totalorder %s50, 1
        %s666 = scalar_select %p665, %s50, 1
        %s667 = scalar_lea.vmem %s5, %s666
        %p668 = pneg %p182
        %p669 = pneg %p179
        %p670 = scmp.lt.s32.totalorder %s50, 1
        %s671 = scalar_select %p670, %s50, 1
        %s672 = scalar_lea.vmem %s6, %s671
        %p673 = pneg %p208
        %p674 = pneg %p205
        %s675 = sand.u32 %s45, 1
        %s676 = scalar_lea.sflag [#allocation11], %s675
        %s677 = sand.u32 %s221, 1
        %s678 = scalar_lea.vmem [#allocation12], %s677
        %p679 = pneg %p234
        %p680 = pneg %p231
        %s681 = sand.u32 %s45, 1
        %s682 = scalar_lea.sflag [#allocation14], %s681
        %s683 = sand.u32 %s247, 1
        %s684 = smul.addr %s683, 144
        %s685 = scalar_lea.vmem [#allocation13], %s684
        %p686 = pneg %p260
        %p687 = pneg %p257
        %p688 = scmp.lt.s32.totalorder %s50, 1
        %s689 = scalar_select %p688, %s50, 1
        %s690 = scalar_lea.vmem %s9, %s689
        %p691 = pneg %p286
        %p692 = pneg %p283
        %p693 = scmp.lt.s32.totalorder %s50, 1
        %s694 = scalar_select %p693, %s50, 1
        %s695 = smul.addr %s694, 8
        %s696 = smul.addr %s695, 4
        %s697 = scalar_lea.vmem %s10, %s696
        %p698 = pneg %p312
        %p699 = pneg %p309
        %p700 = scmp.lt.s32.totalorder %s50, 1
        %s701 = scalar_select %p700, %s50, 1
        %s702 = scalar_lea.vmem %s11, %s701
        %p703 = pneg %p338
        %p704 = pneg %p335
        %p705 = scmp.lt.s32.totalorder %s50, 1
        %s706 = scalar_select %p705, %s50, 1
        %s707 = scalar_lea.vmem %s12, %s706
        %p708 = pneg %p364
        %p709 = pneg %p361
        %s710 = sand.u32 %s45, 1
        %s711 = scalar_lea.sflag [#allocation14], %s710
        %s712 = sand.u32 %s377, 1
        %s713 = scalar_lea.vmem [#allocation15], %s712
        %p714 = pneg %p390
        %p715 = pneg %p387
        %p716 = pneg %p416
        %p717 = pneg %p413
        %s718 = sand.u32 %s403, 1
        %s719 = scalar_lea.sflag [#allocation9], %s718
        %s720 = sand.u32 %s403, 1
        %s721 = smul.addr %s720, 32
        %s722 = scalar_lea.vmem [#allocation16], %s721
        %p723 = scmp.lt.s32.totalorder %s49, 1
        %s724 = scalar_select %p723, %s49, 1
        %s725 = smul.addr %s724, 4
        %s726 = smul.addr %s725, 8
        %s727 = scalar_lea.vmem %s1, %s726
        %p728 = scmp.lt.s32.totalorder %s50, 1
        %s729 = scalar_select %p728, %s50, 1
        %s730 = smul.addr %s729, 4
        %s731 = smul.addr %s730, 4
        %s732 = scalar_lea.vmem %s2, %s731
        %p733 = scmp.lt.s32.totalorder %s50, 1
        %s734 = scalar_select %p733, %s50, 1
        %s735 = scalar_lea.vmem %s5, %s734
        %p736 = scmp.lt.s32.totalorder %s50, 1
        %s737 = scalar_select %p736, %s50, 1
        %s738 = scalar_lea.vmem %s6, %s737
        %p739 = scmp.lt.s32.totalorder %s50, 1
        %s740 = scalar_select %p739, %s50, 1
        %s741 = scalar_lea.vmem %s9, %s740
        %p742 = scmp.lt.s32.totalorder %s50, 1
        %s743 = scalar_select %p742, %s50, 1
        %s744 = smul.addr %s743, 8
        %s745 = smul.addr %s744, 4
        %s746 = scalar_lea.vmem %s10, %s745
        %p747 = scmp.lt.s32.totalorder %s50, 1
        %s748 = scalar_select %p747, %s50, 1
        %s749 = scalar_lea.vmem %s11, %s748
        %p750 = scmp.lt.s32.totalorder %s50, 1
        %s751 = scalar_select %p750, %s50, 1
        %s752 = scalar_lea.vmem %s12, %s751
        %s754 = sld [smem:[#allocation6 + %s49]]
        %v755 = vlaneseq
        %v756 = vshrl.u32 %v755, 7
        %v757 = vadd.s32 %v756, 8
        %v758 = vadd.s32 %v756, 16
        %v759 = vadd.s32 %v756, 24
        %v760 = vlaneseq
        %v761 = vand.u32 %v760, 127
        %v762 = vstv %s754
        %vm763 = vcmp.lt.s32.totalorder %v756, %v762
        %vm764 = vcmp.lt.s32.totalorder %v757, %v762
        %vm765 = vcmp.lt.s32.totalorder %v758, %v762
        %vm766 = vcmp.lt.s32.totalorder %v759, %v762
        %v767 = vsel %vm763, 1, 0
        %v768 = vsel %vm764, 1, 0
        %v769 = vsel %vm765, 1, 0
        %v770 = vsel %vm766, 1, 0
        %v771 = vcvt.s32.f32 %v767
        %v772 = vcvt.s32.f32 %v768
        %v773 = vcvt.s32.f32 %v769
        %v774 = vcvt.s32.f32 %v770
        %vm775 = vcmp.lt.s32.totalorder %v761, %v762
        %v776 = vsel %vm775, 0.0, -1e+09
        %p777 = scmp.eq.s32.totalorder %s50, 0
        // Predicated region
        $region93: #{tpu_custom_call.1} parent=71 // pred_check
          %p778 = pneg %p777
        $region94: #{tpu_custom_call.1} parent=71 // pred_check_branch
          %780 = sbr.rel (%p778) target = $region96
        $region95: #{tpu_custom_call.1} parent=71 // pred_region
          %v781 = vld [vmem:[%s727] sm:$0xff]
          %v782 = vld [vmem:[%s727 + $0x8] sm:$0xff]
          %v783 = vld [vmem:[%s727 + $0x10] sm:$0xff]
          %v784 = vld [vmem:[%s727 + $0x18] sm:$0xff]
          %vm785 = vcmask 261120
          %786 = vst.msk [vmem:[%s722] sm:$0xff] %vm785, %v781
          %787 = vst.msk [vmem:[%s722 + $0x8] sm:$0xff] %vm785, %v782
          %788 = vst.msk [vmem:[%s722 + $0x10] sm:$0xff] %vm785, %v783
          %789 = vst.msk [vmem:[%s722 + $0x18] sm:$0xff] %vm785, %v784
        $region96: #{tpu_custom_call.1} parent=71 // pred_fallthru
          _
        %v790 = vld [vmem:[%s722] sm:$0xff]
        %v791 = vld [vmem:[%s722 + $0x8] sm:$0xff]
        %v792 = vld [vmem:[%s722 + $0x10] sm:$0xff]
        %v793 = vld [vmem:[%s722 + $0x18] sm:$0xff]
        %v794 = vpack.c.bf16 %v791, %v790
        %v795 = vpack.c.bf16 %v793, %v792
        %v796 = vld [vmem:[%s732] sm:$0xf]
        %v797 = vld [vmem:[%s732 + $0x4] sm:$0xf]
        %v798 = vld [vmem:[%s732 + $0x8] sm:$0xf]
        %v799 = vld [vmem:[%s732 + $0xc] sm:$0xf]
        %v800 = vld [vmem:[%s594] sm:$0x1]
        %v802 = vperm.slane %v800, 0
        %v808 = vunpack.c.l.b16 %v796
        %v809 = vunpack.c.l.b16 %v797
        %v810 = vunpack.c.l.b16 %v798
        %v811 = vunpack.c.l.b16 %v799
        %v812 = vpack.c.b16 %v809, %v808
        %v813 = vpack.c.b16 %v811, %v810
        %vm816 = vcmask 261120
        %v818 = vsel %vm816, %v794, 0
        %v821 = vsel %vm816, %v795, 0
        %823 = vmatpush.bf16.msra.mxu0 0
        %824 = vmatpush.bf16.msra.mxu0 0
        %825 = vmatpush.bf16.msra.mxu0 0
        %826 = vmatpush.bf16.msra.mxu0 0
        %827 = vmatpush.bf16.msra.mxu0 0
        %828 = vmatpush.bf16.msra.mxu0 0
        %829 = vmatpush.bf16.msra.mxu0 %v813
        %830 = vmatpush.bf16.msra.mxu0 %v812
        %831 = vmatmul.bf16.gmra.mxu0 %v818
        %v832 = vpop.f32.mrf.mxu0
        %v833 = vadd.f32 %v802, %v832
        %v834 = vpop.f32.mrf.mxu0
        %v835 = vadd.f32 %v802, %v834
        %836 = vmatmul.bf16.gmra.mxu0 %v821
        %v837 = vpop.f32.mrf.mxu0
        %v838 = vadd.f32 %v802, %v837
        %v839 = vpop.f32.mrf.mxu0
        %v840 = vadd.f32 %v802, %v839
        %841 = vdwg.mxu0
        %v842 = vpack.c.bf16 %v833, %v833
        %v843 = vpack.c.bf16 %v835, %v835
        %v844 = vpack.c.bf16 %v838, %v838
        %v845 = vpack.c.bf16 %v840, %v840
        %v850 = vunpack.c.l.b16 %v842
        %v851 = vunpack.c.l.b16 %v843
        %v852 = vunpack.c.l.b16 %v844
        %v853 = vunpack.c.l.b16 %v845
        %v854 = vpack.c.b16 %v851, %v850
        %v855 = vpack.c.b16 %v853, %v852
        %856 = vrot.lane.b32.xlu0 %v854, 96
        %v857 = vpop.permute.xlu0 %856
        %858 = vrot.lane.b32.xlu0 %v855, 96
        %v859 = vpop.permute.xlu0 %858
        %vm860 = vcmask 130048
        %v862 = vsel %vm860, %v854, 0
        %v865 = vsel %vm860, %v855, 0
        %v868 = vsel %vm860, %v857, 0
        %v871 = vsel %vm860, %v859, 0
        %873 = vmatpush.bf16.xpose.msra.mxu0 0
        %874 = vmatpush.bf16.xpose.msra.mxu0 0
        %875 = vmatpush.bf16.xpose.msra.mxu0 0
        %876 = vmatpush.bf16.xpose.msra.mxu0 0
        %877 = vmatpush.bf16.xpose.msra.mxu0 0
        %878 = vmatpush.bf16.xpose.msra.mxu0 0
        %879 = vmatpush.bf16.xpose.msra.mxu0 %v871
        %880 = vmatpush.bf16.xpose.msra.mxu0 %v868
        %881 = vmatmul.bf16.gmra.mxu0 %v862
        %v882 = vpop.f32.mrf.mxu0
        %v883 = vadd.f32 %v776, %v882
        %v884 = vpop.f32.mrf.mxu0
        %v885 = vadd.f32 %v776, %v884
        %886 = vmatmul.bf16.gmra.mxu0 %v865
        %v887 = vpop.f32.mrf.mxu0
        %v888 = vadd.f32 %v776, %v887
        %v889 = vpop.f32.mrf.mxu0
        %v890 = vadd.f32 %v776, %v889
        %891 = vdwg.mxu0
        %v892 = vsel %vm816, %v883, -inf
        %893 = vmax.xlane.f32.xlu0 %v892
        %v894 = vpop.xlane.xlu0 %893
        %v895 = vsel %vm816, %v885, -inf
        %896 = vmax.xlane.f32.xlu0 %v895
        %v897 = vpop.xlane.xlu0 %896
        %v898 = vsel %vm816, %v888, -inf
        %899 = vmax.xlane.f32.xlu0 %v898
        %v900 = vpop.xlane.xlu0 %899
        %v901 = vsel %vm816, %v890, -inf
        %902 = vmax.xlane.f32.xlu0 %v901
        %v903 = vpop.xlane.xlu0 %902
        %v904 = vsub.f32 %v883, %v894
        %v905 = vsub.f32 %v885, %v897
        %v906 = vsub.f32 %v888, %v900
        %v907 = vsub.f32 %v890, %v903
        %v908 = vmul.f32 %v904, 1.442695
        %v909 = vpow.pop %v908
        %v910 = vmul.f32 %v905, 1.442695
        %v911 = vpow.pop %v910
        %v912 = vmul.f32 %v906, 1.442695
        %v913 = vpow.pop %v912
        %v914 = vmul.f32 %v907, 1.442695
        %v915 = vpow.pop %v914
        %v916 = vsel %vm816, %v909, 0.0
        %917 = vadd.xlane.f32.xlu0 %v916
        %v918 = vpop.xlane.xlu0 %917
        %v919 = vsel %vm816, %v911, 0.0
        %920 = vadd.xlane.f32.xlu0 %v919
        %v921 = vpop.xlane.xlu0 %920
        %v922 = vsel %vm816, %v913, 0.0
        %923 = vadd.xlane.f32.xlu0 %v922
        %v924 = vpop.xlane.xlu0 %923
        %v925 = vsel %vm816, %v915, 0.0
        %926 = vadd.xlane.f32.xlu0 %v925
        %v927 = vpop.xlane.xlu0 %926
        %v928 = vpack.c.bf16 %v911, %v909
        %v929 = vpack.c.bf16 %v915, %v913
        %930 = vrot.lane.b32.xlu0 %v854, 64
        %v931 = vpop.permute.xlu0 %930
        %932 = vrot.lane.b32.xlu0 %v855, 64
        %v933 = vpop.permute.xlu0 %932
        %v937 = vsel %vm816, %v928, 0
        %v940 = vsel %vm816, %v929, 0
        %942 = vmatpush.bf16.msra.mxu0 0
        %943 = vmatpush.bf16.msra.mxu0 0
        %944 = vmatpush.bf16.msra.mxu0 0
        %945 = vmatpush.bf16.msra.mxu0 0
        %946 = vmatpush.bf16.msra.mxu0 0
        %947 = vmatpush.bf16.msra.mxu0 0
        %948 = vmatpush.bf16.msra.mxu0 %v933
        %949 = vmatpush.bf16.msra.mxu0 %v931
        %950 = vmatmul.bf16.gmra.mxu0 %v937
        %v951 = vpop.f32.mrf.mxu0
        %v952 = vadd.f32 0.0, %v951
        %v953 = vpop.f32.mrf.mxu0
        %v954 = vadd.f32 0.0, %v953
        %955 = vmatmul.bf16.gmra.mxu0 %v940
        %v956 = vpop.f32.mrf.mxu0
        %v957 = vadd.f32 0.0, %v956
        %v958 = vpop.f32.mrf.mxu0
        %v959 = vadd.f32 0.0, %v958
        %960 = vdwg.mxu0
        %v961 = vrcp.pop %v918
        %v962 = vrcp.pop %v921
        %v963 = vrcp.pop %v924
        %v964 = vrcp.pop %v927
        %v965 = vmul.f32 %v952, %v961
        %v966 = vmul.f32 %v954, %v962
        %v967 = vmul.f32 %v957, %v963
        %v968 = vmul.f32 %v959, %v964
        %v969 = vpack.c.bf16 %v965, %v965
        %v970 = vpack.c.bf16 %v966, %v966
        %v971 = vpack.c.bf16 %v967, %v967
        %v972 = vpack.c.bf16 %v968, %v968
        %vm973 = vcmask 125952
        %974 = vst.msk [vmem:[#allocation2] sm:$0xf] %vm973, %v969
        %975 = vst.msk [vmem:[#allocation2 + $0x4] sm:$0xf] %vm973, %v970
        %976 = vst.msk [vmem:[#allocation2 + $0x8] sm:$0xf] %vm973, %v971
        %977 = vst.msk [vmem:[#allocation2 + $0xc] sm:$0xf] %vm973, %v972
        %978 = vrot.lane.b32.xlu0 %v854, 112
        %v979 = vpop.permute.xlu0 %978
        %980 = vrot.lane.b32.xlu0 %v855, 112
        %v981 = vpop.permute.xlu0 %980
        %982 = vrot.lane.b32.xlu0 %v854, 80
        %v983 = vpop.permute.xlu0 %982
        %984 = vrot.lane.b32.xlu0 %v855, 80
        %v985 = vpop.permute.xlu0 %984
        %v987 = vsel %vm860, %v979, 0
        %v990 = vsel %vm860, %v981, 0
        %v993 = vsel %vm860, %v983, 0
        %v996 = vsel %vm860, %v985, 0
        %998 = vmatpush.bf16.xpose.msra.mxu0 0
        %999 = vmatpush.bf16.xpose.msra.mxu0 0
        %1000 = vmatpush.bf16.xpose.msra.mxu0 0
        %1001 = vmatpush.bf16.xpose.msra.mxu0 0
        %1002 = vmatpush.bf16.xpose.msra.mxu0 0
        %1003 = vmatpush.bf16.xpose.msra.mxu0 0
        %1004 = vmatpush.bf16.xpose.msra.mxu0 %v996
        %1005 = vmatpush.bf16.xpose.msra.mxu0 %v993
        %1006 = vmatmul.bf16.gmra.mxu0 %v987
        %v1007 = vpop.f32.mrf.mxu0
        %v1008 = vadd.f32 %v776, %v1007
        %v1009 = vpop.f32.mrf.mxu0
        %v1010 = vadd.f32 %v776, %v1009
        %1011 = vmatmul.bf16.gmra.mxu0 %v990
        %v1012 = vpop.f32.mrf.mxu0
        %v1013 = vadd.f32 %v776, %v1012
        %v1014 = vpop.f32.mrf.mxu0
        %v1015 = vadd.f32 %v776, %v1014
        %1016 = vdwg.mxu0
        %v1017 = vsel %vm816, %v1008, -inf
        %1018 = vmax.xlane.f32.xlu0 %v1017
        %v1019 = vpop.xlane.xlu0 %1018
        %v1020 = vsel %vm816, %v1010, -inf
        %1021 = vmax.xlane.f32.xlu0 %v1020
        %v1022 = vpop.xlane.xlu0 %1021
        %v1023 = vsel %vm816, %v1013, -inf
        %1024 = vmax.xlane.f32.xlu0 %v1023
        %v1025 = vpop.xlane.xlu0 %1024
        %v1026 = vsel %vm816, %v1015, -inf
        %1027 = vmax.xlane.f32.xlu0 %v1026
        %v1028 = vpop.xlane.xlu0 %1027
        %v1029 = vsub.f32 %v1008, %v1019
        %v1030 = vsub.f32 %v1010, %v1022
        %v1031 = vsub.f32 %v1013, %v1025
        %v1032 = vsub.f32 %v1015, %v1028
        %v1033 = vmul.f32 %v1029, 1.442695
        %v1034 = vpow.pop %v1033
        %v1035 = vmul.f32 %v1030, 1.442695
        %v1036 = vpow.pop %v1035
        %v1037 = vmul.f32 %v1031, 1.442695
        %v1038 = vpow.pop %v1037
        %v1039 = vmul.f32 %v1032, 1.442695
        %v1040 = vpow.pop %v1039
        %v1041 = vsel %vm816, %v1034, 0.0
        %1042 = vadd.xlane.f32.xlu0 %v1041
        %v1043 = vpop.xlane.xlu0 %1042
        %v1044 = vsel %vm816, %v1036, 0.0
        %1045 = vadd.xlane.f32.xlu0 %v1044
        %v1046 = vpop.xlane.xlu0 %1045
        %v1047 = vsel %vm816, %v1038, 0.0
        %1048 = vadd.xlane.f32.xlu0 %v1047
        %v1049 = vpop.xlane.xlu0 %1048
        %v1050 = vsel %vm816, %v1040, 0.0
        %1051 = vadd.xlane.f32.xlu0 %v1050
        %v1052 = vpop.xlane.xlu0 %1051
        %v1053 = vpack.c.bf16 %v1036, %v1034
        %v1054 = vpack.c.bf16 %v1040, %v1038
        %1055 = vrot.lane.b32.xlu0 %v854, 48
        %v1056 = vpop.permute.xlu0 %1055
        %1057 = vrot.lane.b32.xlu0 %v855, 48
        %v1058 = vpop.permute.xlu0 %1057
        %v1062 = vsel %vm816, %v1053, 0
        %v1065 = vsel %vm816, %v1054, 0
        %1067 = vmatpush.bf16.msra.mxu0 0
        %1068 = vmatpush.bf16.msra.mxu0 0
        %1069 = vmatpush.bf16.msra.mxu0 0
        %1070 = vmatpush.bf16.msra.mxu0 0
        %1071 = vmatpush.bf16.msra.mxu0 0
        %1072 = vmatpush.bf16.msra.mxu0 0
        %1073 = vmatpush.bf16.msra.mxu0 %v1058
        %1074 = vmatpush.bf16.msra.mxu0 %v1056
        %1075 = vmatmul.bf16.gmra.mxu0 %v1062
        %v1076 = vpop.f32.mrf.mxu0
        %v1077 = vadd.f32 0.0, %v1076
        %v1078 = vpop.f32.mrf.mxu0
        %v1079 = vadd.f32 0.0, %v1078
        %1080 = vmatmul.bf16.gmra.mxu0 %v1065
        %v1081 = vpop.f32.mrf.mxu0
        %v1082 = vadd.f32 0.0, %v1081
        %v1083 = vpop.f32.mrf.mxu0
        %v1084 = vadd.f32 0.0, %v1083
        %1085 = vdwg.mxu0
        %v1086 = vrcp.pop %v1043
        %v1087 = vrcp.pop %v1046
        %v1088 = vrcp.pop %v1049
        %v1089 = vrcp.pop %v1052
        %v1090 = vmul.f32 %v1077, %v1086
        %v1091 = vmul.f32 %v1079, %v1087
        %v1092 = vmul.f32 %v1082, %v1088
        %v1093 = vmul.f32 %v1084, %v1089
        %v1094 = vpack.c.bf16 %v1090, %v1090
        %v1095 = vpack.c.bf16 %v1091, %v1091
        %v1096 = vpack.c.bf16 %v1092, %v1092
        %v1097 = vpack.c.bf16 %v1093, %v1093
        %1102 = vrot.lane.b32.xlu0 %v1094, 16
        %v1103 = vpop.permute.xlu0 %1102
        %1104 = vrot.lane.b32.xlu0 %v1095, 16
        %v1105 = vpop.permute.xlu0 %1104
        %1106 = vrot.lane.b32.xlu0 %v1096, 16
        %v1107 = vpop.permute.xlu0 %1106
        %1108 = vrot.lane.b32.xlu0 %v1097, 16
        %v1109 = vpop.permute.xlu0 %1108
        %vm1114 = vcmask 257152
        %1115 = vst.msk [vmem:[#allocation2] sm:$0xf] %vm1114, %v1103
        %1116 = vst.msk [vmem:[#allocation2 + $0x4] sm:$0xf] %vm1114, %v1105
        %1117 = vst.msk [vmem:[#allocation2 + $0x8] sm:$0xf] %vm1114, %v1107
        %1118 = vst.msk [vmem:[#allocation2 + $0xc] sm:$0xf] %vm1114, %v1109
        %v1119 = vld [vmem:[#allocation2] sm:$0xf]
        %v1120 = vld [vmem:[#allocation2 + $0x4] sm:$0xf]
        %v1121 = vld [vmem:[#allocation2 + $0x8] sm:$0xf]
        %v1122 = vld [vmem:[#allocation2 + $0xc] sm:$0xf]
        %v1123 = vld [vmem:[%s604] sm:$0xf]
        %v1124 = vld [vmem:[%s604 + $0x4] sm:$0xf]
        %v1125 = vld [vmem:[%s604 + $0x8] sm:$0xf]
        %v1126 = vld [vmem:[%s604 + $0xc] sm:$0xf]
        %v1127 = vld [vmem:[%s735] sm:$0x1]
        %v1129 = vperm.slane %v1127, 0
        %v1135 = vunpack.c.l.b16 %v1119
        %v1136 = vunpack.c.l.b16 %v1120
        %v1137 = vunpack.c.l.b16 %v1121
        %v1138 = vunpack.c.l.b16 %v1122
        %v1139 = vpack.c.b16 %v1136, %v1135
        %v1140 = vpack.c.b16 %v1138, %v1137
        %v1145 = vunpack.c.l.b16 %v1123
        %v1146 = vunpack.c.l.b16 %v1124
        %v1147 = vunpack.c.l.b16 %v1125
        %v1148 = vunpack.c.l.b16 %v1126
        %v1149 = vpack.c.b16 %v1146, %v1145
        %v1150 = vpack.c.b16 %v1148, %v1147
        %v1154 = vsel %vm816, %v1139, 0
        %v1157 = vsel %vm816, %v1140, 0
        %1159 = vmatpush.bf16.msra.mxu0 0
        %1160 = vmatpush.bf16.msra.mxu0 0
        %1161 = vmatpush.bf16.msra.mxu0 0
        %1162 = vmatpush.bf16.msra.mxu0 0
        %1163 = vmatpush.bf16.msra.mxu0 0
        %1164 = vmatpush.bf16.msra.mxu0 0
        %1165 = vmatpush.bf16.msra.mxu0 %v1150
        %1166 = vmatpush.bf16.msra.mxu0 %v1149
        %1167 = vmatmul.bf16.gmra.mxu0 %v1154
        %v1168 = vpop.f32.mrf.mxu0
        %v1169 = vadd.f32 %v1129, %v1168
        %v1170 = vpop.f32.mrf.mxu0
        %v1171 = vadd.f32 %v1129, %v1170
        %1172 = vmatmul.bf16.gmra.mxu0 %v1157
        %v1173 = vpop.f32.mrf.mxu0
        %v1174 = vadd.f32 %v1129, %v1173
        %v1175 = vpop.f32.mrf.mxu0
        %v1176 = vadd.f32 %v1129, %v1175
        %1177 = vdwg.mxu0
        %v1178 = vadd.f32 %v1169, %v790
        %v1179 = vadd.f32 %v1171, %v791
        %v1180 = vadd.f32 %v1174, %v792
        %v1181 = vadd.f32 %v1176, %v793
        %v1182 = vld [vmem:[%s738] sm:$0x1]
        %v1183 = vld [vmem:[%s613] sm:$0x1]
        %v1184 = vsel %vm816, %v1178, 0.0
        %1185 = vadd.xlane.f32.xlu0 %v1184
        %v1186 = vpop.xlane.xlu0 %1185
        %v1187 = vsel %vm816, %v1179, 0.0
        %1188 = vadd.xlane.f32.xlu0 %v1187
        %v1189 = vpop.xlane.xlu0 %1188
        %v1190 = vsel %vm816, %v1180, 0.0
        %1191 = vadd.xlane.f32.xlu0 %v1190
        %v1192 = vpop.xlane.xlu0 %1191
        %v1193 = vsel %vm816, %v1181, 0.0
        %1194 = vadd.xlane.f32.xlu0 %v1193
        %v1195 = vpop.xlane.xlu0 %1194
        %v1196 = vrcp.pop 32.0
        %v1197 = vmul.f32 32.0, %v1196
        %v1198 = vsub.f32 1.0, %v1197
        %v1199 = vmul.f32 %v1196, %v1198
        %v1200 = vadd.f32 %v1196, %v1199
        %vm1201 = vweird.f32 %v1196
        %v1202 = vsel %vm1201, %v1196, %v1200
        %v1203 = vmul.f32 %v1186, %v1202
        %v1204 = vmul.f32 %v1189, %v1202
        %v1205 = vmul.f32 %v1192, %v1202
        %v1206 = vmul.f32 %v1195, %v1202
        %v1207 = vsub.f32 %v1178, %v1203
        %v1208 = vsub.f32 %v1179, %v1204
        %v1209 = vsub.f32 %v1180, %v1205
        %v1210 = vsub.f32 %v1181, %v1206
        %v1211 = vmul.f32 %v1207, %v1207
        %v1212 = vmul.f32 %v1208, %v1208
        %v1213 = vmul.f32 %v1209, %v1209
        %v1214 = vmul.f32 %v1210, %v1210
        %v1215 = vsel %vm816, %v1211, 0.0
        %1216 = vadd.xlane.f32.xlu0 %v1215
        %v1217 = vpop.xlane.xlu0 %1216
        %v1218 = vsel %vm816, %v1212, 0.0
        %1219 = vadd.xlane.f32.xlu0 %v1218
        %v1220 = vpop.xlane.xlu0 %1219
        %v1221 = vsel %vm816, %v1213, 0.0
        %1222 = vadd.xlane.f32.xlu0 %v1221
        %v1223 = vpop.xlane.xlu0 %1222
        %v1224 = vsel %vm816, %v1214, 0.0
        %1225 = vadd.xlane.f32.xlu0 %v1224
        %v1226 = vpop.xlane.xlu0 %1225
        %v1227 = vmul.f32 %v1217, %v1202
        %v1228 = vmul.f32 %v1220, %v1202
        %v1229 = vmul.f32 %v1223, %v1202
        %v1230 = vmul.f32 %v1226, %v1202
        %v1231 = vadd.f32 %v1227, 1e-05
        %v1232 = vadd.f32 %v1228, 1e-05
        %v1233 = vadd.f32 %v1229, 1e-05
        %v1234 = vadd.f32 %v1230, 1e-05
        %v1235 = vrsqrt.pop %v1231
        %v1236 = vmul.f32 %v1235, %v1231
        %v1237 = vmul.f32 %v1236, %v1235
        %v1238 = vmul.f32 0.5, %v1237
        %v1239 = vsub.f32 1.5, %v1238
        %v1240 = vmul.f32 %v1235, %v1239
        %vm1241 = vweird.f32 %v1231
        %vm1242 = vweird.f32 %v1235
        %vm1243 = vmor %vm1241, %vm1242
        %v1244 = vsel %vm1243, %v1235, %v1240
        %v1245 = vrsqrt.pop %v1232
        %v1246 = vmul.f32 %v1245, %v1232
        %v1247 = vmul.f32 %v1246, %v1245
        %v1248 = vmul.f32 0.5, %v1247
        %v1249 = vsub.f32 1.5, %v1248
        %v1250 = vmul.f32 %v1245, %v1249
        %vm1251 = vweird.f32 %v1232
        %vm1252 = vweird.f32 %v1245
        %vm1253 = vmor %vm1251, %vm1252
        %v1254 = vsel %vm1253, %v1245, %v1250
        %v1255 = vrsqrt.pop %v1233
        %v1256 = vmul.f32 %v1255, %v1233
        %v1257 = vmul.f32 %v1256, %v1255
        %v1258 = vmul.f32 0.5, %v1257
        %v1259 = vsub.f32 1.5, %v1258
        %v1260 = vmul.f32 %v1255, %v1259
        %vm1261 = vweird.f32 %v1233
        %vm1262 = vweird.f32 %v1255
        %vm1263 = vmor %vm1261, %vm1262
        %v1264 = vsel %vm1263, %v1255, %v1260
        %v1265 = vrsqrt.pop %v1234
        %v1266 = vmul.f32 %v1265, %v1234
        %v1267 = vmul.f32 %v1266, %v1265
        %v1268 = vmul.f32 0.5, %v1267
        %v1269 = vsub.f32 1.5, %v1268
        %v1270 = vmul.f32 %v1265, %v1269
        %vm1271 = vweird.f32 %v1234
        %vm1272 = vweird.f32 %v1265
        %vm1273 = vmor %vm1271, %vm1272
        %v1274 = vsel %vm1273, %v1265, %v1270
        %v1275 = vmul.f32 %v1207, %v1244
        %v1276 = vmul.f32 %v1208, %v1254
        %v1277 = vmul.f32 %v1209, %v1264
        %v1278 = vmul.f32 %v1210, %v1274
        %v1280 = vperm.slane %v1182, 0
        %v1282 = vmul.f32 %v1275, %v1280
        %v1283 = vmul.f32 %v1276, %v1280
        %v1284 = vmul.f32 %v1277, %v1280
        %v1285 = vmul.f32 %v1278, %v1280
        %v1287 = vperm.slane %v1183, 0
        %v1289 = vadd.f32 %v1282, %v1287
        %v1290 = vadd.f32 %v1283, %v1287
        %v1291 = vadd.f32 %v1284, %v1287
        %v1292 = vadd.f32 %v1285, %v1287
        %v1293 = vmul.f32 %v1289, %v771
        %v1294 = vmul.f32 %v1290, %v772
        %v1295 = vmul.f32 %v1291, %v773
        %v1296 = vmul.f32 %v1292, %v774
        %v1297 = vpack.c.bf16 %v1293, %v1293
        %v1298 = vpack.c.bf16 %v1294, %v1294
        %v1299 = vpack.c.bf16 %v1295, %v1295
        %v1300 = vpack.c.bf16 %v1296, %v1296
        %v1301 = vld [vmem:[%s741] sm:$0x1]
        %vm1302 = vcmask 254976
        %1303 = vst.msk [vmem:[#allocation3] sm:$0x3] %vm1302, 0
        %vm1308 = vcmask 1041408
        %vm1309 = vcmask 1045508
        %vm1310 = vmor %vm1308, %vm1309
        %v1311 = vrot.slane %v1297, 6
        %v1312 = vrot.slane %v1311, 4
        %v1313 = vrot.slane %v1298, 6
        %v1314 = vsel %vm1310, %v1312, %v1313
        %v1315 = vrot.slane %v1313, 4
        %v1316 = vrot.slane %v1299, 6
        %v1317 = vsel %vm1310, %v1315, %v1316
        %v1318 = vrot.slane %v1316, 4
        %v1319 = vrot.slane %v1300, 6
        %v1320 = vsel %vm1310, %v1318, %v1319
        %v1321 = vrot.slane %v1319, 4
        %vm1327 = vcmask 257026
        %1328 = vst.msk [vmem:[#allocation3] sm:$0xc] %vm1327, %v1311
        %vm1329 = vcmask 257024
        %1330 = vst.msk [vmem:[#allocation3 + $0x4] sm:$0xf] %vm1329, %v1314
        %1331 = vst.msk [vmem:[#allocation3 + $0x8] sm:$0xf] %vm1329, %v1317
        %1332 = vst.msk [vmem:[#allocation3 + $0xc] sm:$0xf] %vm1329, %v1320
        %1333 = vst.msk [vmem:[#allocation3 + $0x10] sm:$0x3] %vm1302, %v1321
        %1334 = vst.msk [vmem:[#allocation3 + $0x10] sm:$0xc] %vm1327, 0
        %v1335 = vld [vmem:[#allocation3] sm:$0xf]
        %v1336 = vld [vmem:[#allocation3 + $0x4] sm:$0xf]
        %v1337 = vld [vmem:[#allocation3 + $0x8] sm:$0xf]
        %v1338 = vld [vmem:[#allocation3 + $0xc] sm:$0xf]
        %v1339 = vld [vmem:[%s623] sm:$0xf]
        %v1340 = vld [vmem:[%s623 + $0x4] sm:$0xf]
        %v1341 = vld [vmem:[%s623 + $0x8] sm:$0xf]
        %v1342 = vld [vmem:[%s623 + $0xc] sm:$0xf]
        %v1343 = vld [vmem:[#allocation3 + $0x10] sm:$0x1]
        %s1344 = scalar_lea.vmem %s623, 16 [#allocation13]
        %v1345 = vld [vmem:[%s1344] sm:$0xf]
        %v1346 = vld [vmem:[%s1344 + $0x4] sm:$0xf]
        %v1347 = vld [vmem:[%s1344 + $0x8] sm:$0xf]
        %v1348 = vld [vmem:[%s1344 + $0xc] sm:$0xf]
        %v1354 = vunpack.c.l.b16 %v1335
        %v1355 = vunpack.c.l.b16 %v1336
        %v1356 = vunpack.c.l.b16 %v1337
        %v1357 = vunpack.c.l.b16 %v1338
        %v1358 = vunpack.c.l.b16 %v1343
        %v1359 = vpack.c.b16 %v1355, %v1354
        %v1360 = vpack.c.b16 %v1357, %v1356
        %v1361 = vpack.c.b16 %v1358, %v1358
        %vm1362 = vsmask.f32 7424
        %v1364 = vshrl.u32 %v1359, 16
        %v1366 = vshll.u32 %v1359, 16
        %v1368 = vrot.slane %v1366, 1
        %v1369 = vor.u32 %v1364, %v1368
        %v1371 = vshll.u32 %v1360, 16
        %v1373 = vrot.slane %v1371, 1
        %v1374 = vsel %vm1362, %v1369, %v1373
        %v1375 = vshrl.u32 %v1360, 16
        %v1377 = vor.u32 %v1375, %v1373
        %v1379 = vshll.u32 %v1361, 16
        %v1381 = vrot.slane %v1379, 1
        %v1382 = vsel %vm1362, %v1377, %v1381
        %v1387 = vunpack.c.l.b16 %v1345
        %v1388 = vunpack.c.l.b16 %v1346
        %v1389 = vunpack.c.l.b16 %v1347
        %v1390 = vunpack.c.l.b16 %v1348
        %v1391 = vpack.c.b16 %v1388, %v1387
        %v1392 = vpack.c.b16 %v1390, %v1389
        %v1396 = vsel %vm816, %v1374, 0
        %v1399 = vsel %vm816, %v1382, 0
        %1401 = vmatpush.bf16.msra.mxu0 0
        %1402 = vmatpush.bf16.msra.mxu0 0
        %1403 = vmatpush.bf16.msra.mxu0 0
        %1404 = vmatpush.bf16.msra.mxu0 0
        %1405 = vmatpush.bf16.msra.mxu0 0
        %1406 = vmatpush.bf16.msra.mxu0 0
        %1407 = vmatpush.bf16.msra.mxu0 %v1392
        %1408 = vmatpush.bf16.msra.mxu0 %v1391
        %1409 = vmatmul.bf16.gmra.mxu0 %v1396
        %v1410 = vpop.f32.mrf.mxu0
        %v1411 = vadd.f32 0.0, %v1410
        %v1412 = vpop.f32.mrf.mxu0
        %v1413 = vadd.f32 0.0, %v1412
        %1414 = vmatmul.bf16.gmra.mxu0 %v1399
        %v1415 = vpop.f32.mrf.mxu0
        %v1416 = vadd.f32 0.0, %v1415
        %v1417 = vpop.f32.mrf.mxu0
        %v1418 = vadd.f32 0.0, %v1417
        %1419 = vdwg.mxu0
        %v1424 = vunpack.c.l.b16 %v1339
        %v1425 = vunpack.c.l.b16 %v1340
        %v1426 = vunpack.c.l.b16 %v1341
        %v1427 = vunpack.c.l.b16 %v1342
        %v1428 = vpack.c.b16 %v1425, %v1424
        %v1429 = vpack.c.b16 %v1427, %v1426
        %v1432 = vsel %vm816, %v1359, 0
        %v1434 = vsel %vm816, %v1360, 0
        %1436 = vmatpush.bf16.msra.mxu0 0
        %1437 = vmatpush.bf16.msra.mxu0 0
        %1438 = vmatpush.bf16.msra.mxu0 0
        %1439 = vmatpush.bf16.msra.mxu0 0
        %1440 = vmatpush.bf16.msra.mxu0 0
        %1441 = vmatpush.bf16.msra.mxu0 0
        %1442 = vmatpush.bf16.msra.mxu0 %v1429
        %1443 = vmatpush.bf16.msra.mxu0 %v1428
        %1444 = vmatmul.bf16.gmra.mxu0 %v1432
        %v1445 = vpop.f32.mrf.mxu0
        %v1446 = vadd.f32 %v1411, %v1445
        %v1447 = vpop.f32.mrf.mxu0
        %v1448 = vadd.f32 %v1413, %v1447
        %1449 = vmatmul.bf16.gmra.mxu0 %v1434
        %v1450 = vpop.f32.mrf.mxu0
        %v1451 = vadd.f32 %v1416, %v1450
        %v1452 = vpop.f32.mrf.mxu0
        %v1453 = vadd.f32 %v1418, %v1452
        %1454 = vdwg.mxu0
        %v1455 = vld [vmem:[#allocation3] sm:$0xe]
        %s1456 = scalar_lea.vmem %s623, 32 [#allocation13]
        %v1457 = vld [vmem:[%s1456] sm:$0xf]
        %v1458 = vld [vmem:[%s1456 + $0x4] sm:$0xf]
        %v1459 = vld [vmem:[%s1456 + $0x8] sm:$0xf]
        %v1460 = vld [vmem:[%s1456 + $0xc] sm:$0xf]
        %v1462 = vunpack.c.l.b16 %v1455
        %v1463 = vpack.c.b16 %v1355, %v1462
        %vm1464 = vcmask 1046528
        %v1465 = vrot.slane %v1463, 1
        %v1466 = vrot.slane %v1360, 1
        %v1467 = vsel %vm1464, %v1465, %v1466
        %v1468 = vrot.slane %v1361, 1
        %v1469 = vsel %vm1464, %v1466, %v1468
        %v1474 = vunpack.c.l.b16 %v1457
        %v1475 = vunpack.c.l.b16 %v1458
        %v1476 = vunpack.c.l.b16 %v1459
        %v1477 = vunpack.c.l.b16 %v1460
        %v1478 = vpack.c.b16 %v1475, %v1474
        %v1479 = vpack.c.b16 %v1477, %v1476
        %v1483 = vsel %vm816, %v1467, 0
        %v1486 = vsel %vm816, %v1469, 0
        %1488 = vmatpush.bf16.msra.mxu0 0
        %1489 = vmatpush.bf16.msra.mxu0 0
        %1490 = vmatpush.bf16.msra.mxu0 0
        %1491 = vmatpush.bf16.msra.mxu0 0
        %1492 = vmatpush.bf16.msra.mxu0 0
        %1493 = vmatpush.bf16.msra.mxu0 0
        %1494 = vmatpush.bf16.msra.mxu0 %v1479
        %1495 = vmatpush.bf16.msra.mxu0 %v1478
        %1496 = vmatmul.bf16.gmra.mxu0 %v1483
        %v1497 = vpop.f32.mrf.mxu0
        %v1498 = vadd.f32 0.0, %v1497
        %v1499 = vpop.f32.mrf.mxu0
        %v1500 = vadd.f32 0.0, %v1499
        %1501 = vmatmul.bf16.gmra.mxu0 %v1486
        %v1502 = vpop.f32.mrf.mxu0
        %v1503 = vadd.f32 0.0, %v1502
        %v1504 = vpop.f32.mrf.mxu0
        %v1505 = vadd.f32 0.0, %v1504
        %1506 = vdwg.mxu0
        %v1507 = vadd.f32 %v1446, %v1498
        %v1508 = vadd.f32 %v1448, %v1500
        %v1509 = vadd.f32 %v1451, %v1503
        %v1510 = vadd.f32 %v1453, %v1505
        %v1511 = vld [vmem:[#allocation3 + $0x10] sm:$0x3]
        %s1512 = scalar_lea.vmem %s623, 48 [#allocation13]
        %v1513 = vld [vmem:[%s1512] sm:$0xf]
        %v1514 = vld [vmem:[%s1512 + $0x4] sm:$0xf]
        %v1515 = vld [vmem:[%s1512 + $0x8] sm:$0xf]
        %v1516 = vld [vmem:[%s1512 + $0xc] sm:$0xf]
        %v1518 = vunpack.c.l.b16 %v1511
        %v1519 = vpack.c.b16 %v1518, %v1518
        %vm1520 = vsmask.f32 6400
        %v1522 = vshrl.u32 %v1463, 16
        %v1524 = vrot.slane %v1522, 1
        %v1525 = vshll.u32 %v1463, 16
        %v1527 = vrot.slane %v1525, 2
        %v1528 = vor.u32 %v1524, %v1527
        %v1529 = vrot.slane %v1375, 1
        %v1530 = vrot.slane %v1371, 2
        %v1531 = vor.u32 %v1529, %v1530
        %v1532 = vsel %vm1520, %v1528, %v1531
        %v1534 = vshrl.u32 %v1519, 16
        %v1536 = vrot.slane %v1534, 1
        %v1537 = vshll.u32 %v1519, 16
        %v1539 = vrot.slane %v1537, 2
        %v1540 = vor.u32 %v1536, %v1539
        %v1541 = vsel %vm1520, %v1531, %v1540
        %v1546 = vunpack.c.l.b16 %v1513
        %v1547 = vunpack.c.l.b16 %v1514
        %v1548 = vunpack.c.l.b16 %v1515
        %v1549 = vunpack.c.l.b16 %v1516
        %v1550 = vpack.c.b16 %v1547, %v1546
        %v1551 = vpack.c.b16 %v1549, %v1548
        %v1555 = vsel %vm816, %v1532, 0
        %v1558 = vsel %vm816, %v1541, 0
        %1560 = vmatpush.bf16.msra.mxu0 0
        %1561 = vmatpush.bf16.msra.mxu0 0
        %1562 = vmatpush.bf16.msra.mxu0 0
        %1563 = vmatpush.bf16.msra.mxu0 0
        %1564 = vmatpush.bf16.msra.mxu0 0
        %1565 = vmatpush.bf16.msra.mxu0 0
        %1566 = vmatpush.bf16.msra.mxu0 %v1551
        %1567 = vmatpush.bf16.msra.mxu0 %v1550
        %1568 = vmatmul.bf16.gmra.mxu0 %v1555
        %v1569 = vpop.f32.mrf.mxu0
        %v1570 = vadd.f32 0.0, %v1569
        %v1571 = vpop.f32.mrf.mxu0
        %v1572 = vadd.f32 0.0, %v1571
        %1573 = vmatmul.bf16.gmra.mxu0 %v1558
        %v1574 = vpop.f32.mrf.mxu0
        %v1575 = vadd.f32 0.0, %v1574
        %v1576 = vpop.f32.mrf.mxu0
        %v1577 = vadd.f32 0.0, %v1576
        %1578 = vdwg.mxu0
        %v1579 = vadd.f32 %v1507, %v1570
        %v1580 = vadd.f32 %v1508, %v1572
        %v1581 = vadd.f32 %v1509, %v1575
        %v1582 = vadd.f32 %v1510, %v1577
        %v1583 = vld [vmem:[#allocation3] sm:$0xc]
        %s1584 = scalar_lea.vmem %s623, 64 [#allocation13]
        %v1585 = vld [vmem:[%s1584] sm:$0xf]
        %v1586 = vld [vmem:[%s1584 + $0x4] sm:$0xf]
        %v1587 = vld [vmem:[%s1584 + $0x8] sm:$0xf]
        %v1588 = vld [vmem:[%s1584 + $0xc] sm:$0xf]
        %v1590 = vunpack.c.l.b16 %v1583
        %v1591 = vpack.c.b16 %v1355, %v1590
        %vm1592 = vcmask 1045504
        %v1593 = vrot.slane %v1591, 2
        %v1594 = vrot.slane %v1360, 2
        %v1595 = vsel %vm1592, %v1593, %v1594
        %v1596 = vrot.slane %v1519, 2
        %v1597 = vsel %vm1592, %v1594, %v1596
        %v1602 = vunpack.c.l.b16 %v1585
        %v1603 = vunpack.c.l.b16 %v1586
        %v1604 = vunpack.c.l.b16 %v1587
        %v1605 = vunpack.c.l.b16 %v1588
        %v1606 = vpack.c.b16 %v1603, %v1602
        %v1607 = vpack.c.b16 %v1605, %v1604
        %v1611 = vsel %vm816, %v1595, 0
        %v1614 = vsel %vm816, %v1597, 0
        %1616 = vmatpush.bf16.msra.mxu0 0
        %1617 = vmatpush.bf16.msra.mxu0 0
        %1618 = vmatpush.bf16.msra.mxu0 0
        %1619 = vmatpush.bf16.msra.mxu0 0
        %1620 = vmatpush.bf16.msra.mxu0 0
        %1621 = vmatpush.bf16.msra.mxu0 0
        %1622 = vmatpush.bf16.msra.mxu0 %v1607
        %1623 = vmatpush.bf16.msra.mxu0 %v1606
        %1624 = vmatmul.bf16.gmra.mxu0 %v1611
        %v1625 = vpop.f32.mrf.mxu0
        %v1626 = vadd.f32 0.0, %v1625
        %v1627 = vpop.f32.mrf.mxu0
        %v1628 = vadd.f32 0.0, %v1627
        %1629 = vmatmul.bf16.gmra.mxu0 %v1614
        %v1630 = vpop.f32.mrf.mxu0
        %v1631 = vadd.f32 0.0, %v1630
        %v1632 = vpop.f32.mrf.mxu0
        %v1633 = vadd.f32 0.0, %v1632
        %1634 = vdwg.mxu0
        %v1635 = vadd.f32 %v1579, %v1626
        %v1636 = vadd.f32 %v1580, %v1628
        %v1637 = vadd.f32 %v1581, %v1631
        %v1638 = vadd.f32 %v1582, %v1633
        %v1639 = vld [vmem:[#allocation3 + $0x10] sm:$0x7]
        %s1640 = scalar_lea.vmem %s623, 80 [#allocation13]
        %v1641 = vld [vmem:[%s1640] sm:$0xf]
        %v1642 = vld [vmem:[%s1640 + $0x4] sm:$0xf]
        %v1643 = vld [vmem:[%s1640 + $0x8] sm:$0xf]
        %v1644 = vld [vmem:[%s1640 + $0xc] sm:$0xf]
        %v1646 = vunpack.c.l.b16 %v1639
        %v1647 = vpack.c.b16 %v1646, %v1646
        %vm1648 = vsmask.f32 5376
        %v1650 = vshrl.u32 %v1591, 16
        %v1652 = vrot.slane %v1650, 2
        %v1653 = vshll.u32 %v1591, 16
        %v1655 = vrot.slane %v1653, 3
        %v1656 = vor.u32 %v1652, %v1655
        %v1657 = vrot.slane %v1375, 2
        %v1658 = vrot.slane %v1371, 3
        %v1659 = vor.u32 %v1657, %v1658
        %v1660 = vsel %vm1648, %v1656, %v1659
        %v1662 = vshrl.u32 %v1647, 16
        %v1664 = vrot.slane %v1662, 2
        %v1665 = vshll.u32 %v1647, 16
        %v1667 = vrot.slane %v1665, 3
        %v1668 = vor.u32 %v1664, %v1667
        %v1669 = vsel %vm1648, %v1659, %v1668
        %v1674 = vunpack.c.l.b16 %v1641
        %v1675 = vunpack.c.l.b16 %v1642
        %v1676 = vunpack.c.l.b16 %v1643
        %v1677 = vunpack.c.l.b16 %v1644
        %v1678 = vpack.c.b16 %v1675, %v1674
        %v1679 = vpack.c.b16 %v1677, %v1676
        %v1683 = vsel %vm816, %v1660, 0
        %v1686 = vsel %vm816, %v1669, 0
        %1688 = vmatpush.bf16.msra.mxu0 0
        %1689 = vmatpush.bf16.msra.mxu0 0
        %1690 = vmatpush.bf16.msra.mxu0 0
        %1691 = vmatpush.bf16.msra.mxu0 0
        %1692 = vmatpush.bf16.msra.mxu0 0
        %1693 = vmatpush.bf16.msra.mxu0 0
        %1694 = vmatpush.bf16.msra.mxu0 %v1679
        %1695 = vmatpush.bf16.msra.mxu0 %v1678
        %1696 = vmatmul.bf16.gmra.mxu0 %v1683
        %v1697 = vpop.f32.mrf.mxu0
        %v1698 = vadd.f32 0.0, %v1697
        %v1699 = vpop.f32.mrf.mxu0
        %v1700 = vadd.f32 0.0, %v1699
        %1701 = vmatmul.bf16.gmra.mxu0 %v1686
        %v1702 = vpop.f32.mrf.mxu0
        %v1703 = vadd.f32 0.0, %v1702
        %v1704 = vpop.f32.mrf.mxu0
        %v1705 = vadd.f32 0.0, %v1704
        %1706 = vdwg.mxu0
        %v1707 = vadd.f32 %v1635, %v1698
        %v1708 = vadd.f32 %v1636, %v1700
        %v1709 = vadd.f32 %v1637, %v1703
        %v1710 = vadd.f32 %v1638, %v1705
        %v1711 = vld [vmem:[#allocation3] sm:$0x8]
        %s1712 = scalar_lea.vmem %s623, 96 [#allocation13]
        %v1713 = vld [vmem:[%s1712] sm:$0xf]
        %v1714 = vld [vmem:[%s1712 + $0x4] sm:$0xf]
        %v1715 = vld [vmem:[%s1712 + $0x8] sm:$0xf]
        %v1716 = vld [vmem:[%s1712 + $0xc] sm:$0xf]
        %v1718 = vunpack.c.l.b16 %v1711
        %v1719 = vpack.c.b16 %v1355, %v1718
        %vm1720 = vcmask 1044480
        %v1721 = vrot.slane %v1719, 3
        %v1722 = vrot.slane %v1360, 3
        %v1723 = vsel %vm1720, %v1721, %v1722
        %v1724 = vrot.slane %v1647, 3
        %v1725 = vsel %vm1720, %v1722, %v1724
        %v1730 = vunpack.c.l.b16 %v1713
        %v1731 = vunpack.c.l.b16 %v1714
        %v1732 = vunpack.c.l.b16 %v1715
        %v1733 = vunpack.c.l.b16 %v1716
        %v1734 = vpack.c.b16 %v1731, %v1730
        %v1735 = vpack.c.b16 %v1733, %v1732
        %v1739 = vsel %vm816, %v1723, 0
        %v1742 = vsel %vm816, %v1725, 0
        %1744 = vmatpush.bf16.msra.mxu0 0
        %1745 = vmatpush.bf16.msra.mxu0 0
        %1746 = vmatpush.bf16.msra.mxu0 0
        %1747 = vmatpush.bf16.msra.mxu0 0
        %1748 = vmatpush.bf16.msra.mxu0 0
        %1749 = vmatpush.bf16.msra.mxu0 0
        %1750 = vmatpush.bf16.msra.mxu0 %v1735
        %1751 = vmatpush.bf16.msra.mxu0 %v1734
        %1752 = vmatmul.bf16.gmra.mxu0 %v1739
        %v1753 = vpop.f32.mrf.mxu0
        %v1754 = vadd.f32 0.0, %v1753
        %v1755 = vpop.f32.mrf.mxu0
        %v1756 = vadd.f32 0.0, %v1755
        %1757 = vmatmul.bf16.gmra.mxu0 %v1742
        %v1758 = vpop.f32.mrf.mxu0
        %v1759 = vadd.f32 0.0, %v1758
        %v1760 = vpop.f32.mrf.mxu0
        %v1761 = vadd.f32 0.0, %v1760
        %1762 = vdwg.mxu0
        %v1763 = vadd.f32 %v1707, %v1754
        %v1764 = vadd.f32 %v1708, %v1756
        %v1765 = vadd.f32 %v1709, %v1759
        %v1766 = vadd.f32 %v1710, %v1761
        %v1767 = vld [vmem:[#allocation3 + $0x10] sm:$0xf]
        %s1768 = scalar_lea.vmem %s623, 112 [#allocation13]
        %v1769 = vld [vmem:[%s1768] sm:$0xf]
        %v1770 = vld [vmem:[%s1768 + $0x4] sm:$0xf]
        %v1771 = vld [vmem:[%s1768 + $0x8] sm:$0xf]
        %v1772 = vld [vmem:[%s1768 + $0xc] sm:$0xf]
        %v1774 = vunpack.c.l.b16 %v1767
        %v1775 = vpack.c.b16 %v1774, %v1774
        %vm1776 = vsmask.f32 4352
        %v1778 = vshrl.u32 %v1719, 16
        %v1780 = vrot.slane %v1778, 3
        %v1781 = vshll.u32 %v1719, 16
        %v1783 = vrot.slane %v1781, 4
        %v1784 = vor.u32 %v1780, %v1783
        %v1785 = vrot.slane %v1375, 3
        %v1786 = vrot.slane %v1371, 4
        %v1787 = vor.u32 %v1785, %v1786
        %v1788 = vsel %vm1776, %v1784, %v1787
        %v1790 = vshrl.u32 %v1775, 16
        %v1792 = vrot.slane %v1790, 3
        %v1793 = vshll.u32 %v1775, 16
        %v1795 = vrot.slane %v1793, 4
        %v1796 = vor.u32 %v1792, %v1795
        %v1797 = vsel %vm1776, %v1787, %v1796
        %v1802 = vunpack.c.l.b16 %v1769
        %v1803 = vunpack.c.l.b16 %v1770
        %v1804 = vunpack.c.l.b16 %v1771
        %v1805 = vunpack.c.l.b16 %v1772
        %v1806 = vpack.c.b16 %v1803, %v1802
        %v1807 = vpack.c.b16 %v1805, %v1804
        %v1811 = vsel %vm816, %v1788, 0
        %v1814 = vsel %vm816, %v1797, 0
        %1816 = vmatpush.bf16.msra.mxu0 0
        %1817 = vmatpush.bf16.msra.mxu0 0
        %1818 = vmatpush.bf16.msra.mxu0 0
        %1819 = vmatpush.bf16.msra.mxu0 0
        %1820 = vmatpush.bf16.msra.mxu0 0
        %1821 = vmatpush.bf16.msra.mxu0 0
        %1822 = vmatpush.bf16.msra.mxu0 %v1807
        %1823 = vmatpush.bf16.msra.mxu0 %v1806
        %1824 = vmatmul.bf16.gmra.mxu0 %v1811
        %v1825 = vpop.f32.mrf.mxu0
        %v1826 = vadd.f32 0.0, %v1825
        %v1827 = vpop.f32.mrf.mxu0
        %v1828 = vadd.f32 0.0, %v1827
        %1829 = vmatmul.bf16.gmra.mxu0 %v1814
        %v1830 = vpop.f32.mrf.mxu0
        %v1831 = vadd.f32 0.0, %v1830
        %v1832 = vpop.f32.mrf.mxu0
        %v1833 = vadd.f32 0.0, %v1832
        %1834 = vdwg.mxu0
        %v1835 = vadd.f32 %v1763, %v1826
        %v1836 = vadd.f32 %v1764, %v1828
        %v1837 = vadd.f32 %v1765, %v1831
        %v1838 = vadd.f32 %v1766, %v1833
        %s1839 = scalar_lea.vmem %s623, 128 [#allocation13]
        %v1840 = vld [vmem:[%s1839] sm:$0xf]
        %v1841 = vld [vmem:[%s1839 + $0x4] sm:$0xf]
        %v1842 = vld [vmem:[%s1839 + $0x8] sm:$0xf]
        %v1843 = vld [vmem:[%s1839 + $0xc] sm:$0xf]
        %v1844 = vpack.c.b16 %v1356, %v1355
        %v1845 = vpack.c.b16 %v1774, %v1357
        %v1850 = vunpack.c.l.b16 %v1840
        %v1851 = vunpack.c.l.b16 %v1841
        %v1852 = vunpack.c.l.b16 %v1842
        %v1853 = vunpack.c.l.b16 %v1843
        %v1854 = vpack.c.b16 %v1851, %v1850
        %v1855 = vpack.c.b16 %v1853, %v1852
        %v1859 = vsel %vm816, %v1844, 0
        %v1862 = vsel %vm816, %v1845, 0
        %1864 = vmatpush.bf16.msra.mxu0 0
        %1865 = vmatpush.bf16.msra.mxu0 0
        %1866 = vmatpush.bf16.msra.mxu0 0
        %1867 = vmatpush.bf16.msra.mxu0 0
        %1868 = vmatpush.bf16.msra.mxu0 0
        %1869 = vmatpush.bf16.msra.mxu0 0
        %1870 = vmatpush.bf16.msra.mxu0 %v1855
        %1871 = vmatpush.bf16.msra.mxu0 %v1854
        %1872 = vmatmul.bf16.gmra.mxu0 %v1859
        %v1873 = vpop.f32.mrf.mxu0
        %v1874 = vadd.f32 0.0, %v1873
        %v1875 = vpop.f32.mrf.mxu0
        %v1876 = vadd.f32 0.0, %v1875
        %1877 = vmatmul.bf16.gmra.mxu0 %v1862
        %v1878 = vpop.f32.mrf.mxu0
        %v1879 = vadd.f32 0.0, %v1878
        %v1880 = vpop.f32.mrf.mxu0
        %v1881 = vadd.f32 0.0, %v1880
        %1882 = vdwg.mxu0
        %v1883 = vadd.f32 %v1835, %v1874
        %v1884 = vadd.f32 %v1836, %v1876
        %v1885 = vadd.f32 %v1837, %v1879
        %v1886 = vadd.f32 %v1838, %v1881
        %v1888 = vperm.slane %v1301, 0
        %v1890 = vadd.f32 %v1883, %v1888
        %v1891 = vadd.f32 %v1884, %v1888
        %v1892 = vadd.f32 %v1885, %v1888
        %v1893 = vadd.f32 %v1886, %v1888
        %v1894 = vmax.f32 %v1890, 0.0
        %v1895 = vmax.f32 %v1891, 0.0
        %v1896 = vmax.f32 %v1892, 0.0
        %v1897 = vmax.f32 %v1893, 0.0
        %v1898 = vpack.c.bf16 %v1895, %v1894
        %v1899 = vpack.c.bf16 %v1897, %v1896
        %v1900 = vld [vmem:[%s749] sm:$0x1]
        %v1901 = vld [vmem:[%s746] sm:$0xf]
        %v1902 = vld [vmem:[%s746 + $0x4] sm:$0xf]
        %v1903 = vld [vmem:[%s746 + $0x8] sm:$0xf]
        %v1904 = vld [vmem:[%s746 + $0xc] sm:$0xf]
        %v1905 = vld [vmem:[%s746 + $0x10] sm:$0xf]
        %v1906 = vld [vmem:[%s746 + $0x14] sm:$0xf]
        %v1907 = vld [vmem:[%s746 + $0x18] sm:$0xf]
        %v1908 = vld [vmem:[%s746 + $0x1c] sm:$0xf]
        %v1910 = vperm.slane %v1900, 0
        %v1920 = vunpack.c.l.b16 %v1901
        %v1921 = vunpack.c.l.b16 %v1902
        %v1922 = vunpack.c.l.b16 %v1903
        %v1923 = vunpack.c.l.b16 %v1904
        %v1924 = vunpack.c.l.b16 %v1905
        %v1925 = vunpack.c.l.b16 %v1906
        %v1926 = vunpack.c.l.b16 %v1907
        %v1927 = vunpack.c.l.b16 %v1908
        %v1928 = vpack.c.b16 %v1921, %v1920
        %v1929 = vpack.c.b16 %v1923, %v1922
        %v1930 = vpack.c.b16 %v1925, %v1924
        %v1931 = vpack.c.b16 %v1927, %v1926
        %vm1936 = vcmask 523264
        %v1938 = vsel %vm1936, %v1898, 0
        %v1941 = vsel %vm1936, %v1899, 0
        %1943 = vmatpush.bf16.msra.mxu0 0
        %1944 = vmatpush.bf16.msra.mxu0 0
        %1945 = vmatpush.bf16.msra.mxu0 0
        %1946 = vmatpush.bf16.msra.mxu0 0
        %1947 = vmatpush.bf16.msra.mxu0 %v1931
        %1948 = vmatpush.bf16.msra.mxu0 %v1930
        %1949 = vmatpush.bf16.msra.mxu0 %v1929
        %1950 = vmatpush.bf16.msra.mxu0 %v1928
        %1951 = vmatmul.bf16.gmra.mxu0 %v1938
        %v1952 = vpop.f32.mrf.mxu0
        %v1953 = vadd.f32 %v1910, %v1952
        %v1954 = vpop.f32.mrf.mxu0
        %v1955 = vadd.f32 %v1910, %v1954
        %1956 = vmatmul.bf16.gmra.mxu0 %v1941
        %v1957 = vpop.f32.mrf.mxu0
        %v1958 = vadd.f32 %v1910, %v1957
        %v1959 = vpop.f32.mrf.mxu0
        %v1960 = vadd.f32 %v1910, %v1959
        %1961 = vdwg.mxu0
        %v1962 = vadd.f32 %v1953, %v1293
        %v1963 = vadd.f32 %v1955, %v1294
        %v1964 = vadd.f32 %v1958, %v1295
        %v1965 = vadd.f32 %v1960, %v1296
        %v1966 = vld [vmem:[%s752] sm:$0x1]
        %v1967 = vld [vmem:[%s632] sm:$0x1]
        %v1968 = vsel %vm816, %v1962, 0.0
        %1969 = vadd.xlane.f32.xlu0 %v1968
        %v1970 = vpop.xlane.xlu0 %1969
        %v1971 = vsel %vm816, %v1963, 0.0
        %1972 = vadd.xlane.f32.xlu0 %v1971
        %v1973 = vpop.xlane.xlu0 %1972
        %v1974 = vsel %vm816, %v1964, 0.0
        %1975 = vadd.xlane.f32.xlu0 %v1974
        %v1976 = vpop.xlane.xlu0 %1975
        %v1977 = vsel %vm816, %v1965, 0.0
        %1978 = vadd.xlane.f32.xlu0 %v1977
        %v1979 = vpop.xlane.xlu0 %1978
        %v1980 = vmul.f32 %v1970, %v1202
        %v1981 = vmul.f32 %v1973, %v1202
        %v1982 = vmul.f32 %v1976, %v1202
        %v1983 = vmul.f32 %v1979, %v1202
        %v1984 = vsub.f32 %v1962, %v1980
        %v1985 = vsub.f32 %v1963, %v1981
        %v1986 = vsub.f32 %v1964, %v1982
        %v1987 = vsub.f32 %v1965, %v1983
        %v1988 = vmul.f32 %v1984, %v1984
        %v1989 = vmul.f32 %v1985, %v1985
        %v1990 = vmul.f32 %v1986, %v1986
        %v1991 = vmul.f32 %v1987, %v1987
        %v1992 = vsel %vm816, %v1988, 0.0
        %1993 = vadd.xlane.f32.xlu0 %v1992
        %v1994 = vpop.xlane.xlu0 %1993
        %v1995 = vsel %vm816, %v1989, 0.0
        %1996 = vadd.xlane.f32.xlu0 %v1995
        %v1997 = vpop.xlane.xlu0 %1996
        %v1998 = vsel %vm816, %v1990, 0.0
        %1999 = vadd.xlane.f32.xlu0 %v1998
        %v2000 = vpop.xlane.xlu0 %1999
        %v2001 = vsel %vm816, %v1991, 0.0
        %2002 = vadd.xlane.f32.xlu0 %v2001
        %v2003 = vpop.xlane.xlu0 %2002
        %v2004 = vmul.f32 %v1994, %v1202
        %v2005 = vmul.f32 %v1997, %v1202
        %v2006 = vmul.f32 %v2000, %v1202
        %v2007 = vmul.f32 %v2003, %v1202
        %v2008 = vadd.f32 %v2004, 1e-05
        %v2009 = vadd.f32 %v2005, 1e-05
        %v2010 = vadd.f32 %v2006, 1e-05
        %v2011 = vadd.f32 %v2007, 1e-05
        %v2012 = vrsqrt.pop %v2008
        %v2013 = vmul.f32 %v2012, %v2008
        %v2014 = vmul.f32 %v2013, %v2012
        %v2015 = vmul.f32 0.5, %v2014
        %v2016 = vsub.f32 1.5, %v2015
        %v2017 = vmul.f32 %v2012, %v2016
        %vm2018 = vweird.f32 %v2008
        %vm2019 = vweird.f32 %v2012
        %vm2020 = vmor %vm2018, %vm2019
        %v2021 = vsel %vm2020, %v2012, %v2017
        %v2022 = vrsqrt.pop %v2009
        %v2023 = vmul.f32 %v2022, %v2009
        %v2024 = vmul.f32 %v2023, %v2022
        %v2025 = vmul.f32 0.5, %v2024
        %v2026 = vsub.f32 1.5, %v2025
        %v2027 = vmul.f32 %v2022, %v2026
        %vm2028 = vweird.f32 %v2009
        %vm2029 = vweird.f32 %v2022
        %vm2030 = vmor %vm2028, %vm2029
        %v2031 = vsel %vm2030, %v2022, %v2027
        %v2032 = vrsqrt.pop %v2010
        %v2033 = vmul.f32 %v2032, %v2010
        %v2034 = vmul.f32 %v2033, %v2032
        %v2035 = vmul.f32 0.5, %v2034
        %v2036 = vsub.f32 1.5, %v2035
        %v2037 = vmul.f32 %v2032, %v2036
        %vm2038 = vweird.f32 %v2010
        %vm2039 = vweird.f32 %v2032
        %vm2040 = vmor %vm2038, %vm2039
        %v2041 = vsel %vm2040, %v2032, %v2037
        %v2042 = vrsqrt.pop %v2011
        %v2043 = vmul.f32 %v2042, %v2011
        %v2044 = vmul.f32 %v2043, %v2042
        %v2045 = vmul.f32 0.5, %v2044
        %v2046 = vsub.f32 1.5, %v2045
        %v2047 = vmul.f32 %v2042, %v2046
        %vm2048 = vweird.f32 %v2011
        %vm2049 = vweird.f32 %v2042
        %vm2050 = vmor %vm2048, %vm2049
        %v2051 = vsel %vm2050, %v2042, %v2047
        %v2052 = vmul.f32 %v1984, %v2021
        %v2053 = vmul.f32 %v1985, %v2031
        %v2054 = vmul.f32 %v1986, %v2041
        %v2055 = vmul.f32 %v1987, %v2051
        %v2057 = vperm.slane %v1966, 0
        %v2059 = vmul.f32 %v2052, %v2057
        %v2060 = vmul.f32 %v2053, %v2057
        %v2061 = vmul.f32 %v2054, %v2057
        %v2062 = vmul.f32 %v2055, %v2057
        %v2064 = vperm.slane %v1967, 0
        %v2066 = vadd.f32 %v2059, %v2064
        %v2067 = vadd.f32 %v2060, %v2064
        %v2068 = vadd.f32 %v2061, %v2064
        %v2069 = vadd.f32 %v2062, %v2064
        %v2070 = vmul.f32 %v2066, %v771
        %v2071 = vmul.f32 %v2067, %v772
        %v2072 = vmul.f32 %v2068, %v773
        %v2073 = vmul.f32 %v2069, %v774
        %2074 = vst.msk [vmem:[%s722] sm:$0xff] %vm816, %v2070
        %2075 = vst.msk [vmem:[%s722 + $0x8] sm:$0xff] %vm816, %v2071
        %2076 = vst.msk [vmem:[%s722 + $0x10] sm:$0xff] %vm816, %v2072
        %2077 = vst.msk [vmem:[%s722 + $0x18] sm:$0xff] %vm816, %v2073
        %s2078 = sand.u32 %s403, 1
        %s2079 = scalar_lea.sflag [#allocation9], %s2078
        %s2080 = sand.u32 %s403, 1
        %s2081 = smul.addr %s2080, 32
        %s2082 = scalar_lea.vmem [#allocation16], %s2081
        // Predicated region
        $region97: #{tpu_custom_call.1} parent=71 // pred_check
          %p2083 = pneg %p413
        $region98: #{tpu_custom_call.1} parent=71 // pred_check_branch
          %2085 = sbr.rel (%p2083) target = $region100
        $region99: #{tpu_custom_call.1} parent=71 // pred_region
          %2087 = vsyncadd %s2079, 0
          %s2088 = smul.addr %s49, 4
          %s2089 = smul.addr %s2088, 8
          %s2090 = scalar_lea.hbm %s14, %s2089
          %s2091 = sshll.u32 %s2082, 4
          %s2092 = int_to_ptr.vmem [resolvable:$true] %s2091
          %s2093 = sshll.u32 %s2090, 4
          %s2094 = int_to_ptr.hbm [resolvable:$true] %s2093
          %2099 = dma.vmem_to_hbm [thread:$0]  %s2092, 512, %s2094, %s2079, 128, 128, 8
        $region100: #{tpu_custom_call.1} parent=71 // pred_fallthru
          _
      $region72: #{tpu_custom_call.1} parent=5 // pred_fallthru
        _
      %p2100 = scmp.le.s32.totalorder 2, %s40
      // Predicated region
      $region101: #{tpu_custom_call.1} parent=5 // pred_check
        %p2101 = pneg %p2100
      $region102: #{tpu_custom_call.1} parent=5 // pred_check_branch
        %2103 = sbr.rel (%p2101) target = $region104
      $region103: #{tpu_custom_call.1} parent=5 // pred_region
        %s2104 = ssub.s32 %s40, 2
        // Predicated region
        $region105: #{tpu_custom_call.1} parent=103 // pred_check
          %p2105 = pneg %p419
        $region106: #{tpu_custom_call.1} parent=103 // pred_check_branch
          %2107 = sbr.rel (%p2105) target = $region108
        $region107: #{tpu_custom_call.1} parent=103 // pred_region
          %s2108 = sand.u32 %s404, 1
          %s2109 = scalar_lea.sflag [#allocation9], %s2108
          %s2110 = sand.u32 %s404, 1
          %s2111 = smul.addr %s2110, 32
          %s2112 = scalar_lea.vmem [#allocation16], %s2111
          %2114 = dma.done %s2109, 512
        $region108: #{tpu_custom_call.1} parent=103 // pred_fallthru
          _
      $region104: #{tpu_custom_call.1} parent=5 // pred_fallthru
        _
    $region6: #{tpu_custom_call.1} parent=1 // loop_footer
      %s44 = sadd.s32 1, %s40
    $region7: #{tpu_custom_call.1} parent=1 // loop_footer_branch
      %39 = sbr.rel target = $region3
    $region8: #{tpu_custom_call.1} parent=1 // loop_exit
      _
    %2115 = vsyncpa [#allocation8], 1
    %s2116 = scalar_lea.sflag [#allocation8], 1
    %2117 = vsyncpa %s2116, 1
    %2118 = vsyncpa [#allocation11], 1
    %s2119 = scalar_lea.sflag [#allocation11], 1
    %2120 = vsyncpa %s2119, 1
    %2121 = vsyncpa [#allocation14], 1
    %s2122 = scalar_lea.sflag [#allocation14], 1
    %2123 = vsyncpa %s2122, 1
    %2124 = vsyncpa [#allocation9], 1
    %s2125 = scalar_lea.sflag [#allocation9], 1
    %2126 = vsyncpa %s2125, 1

</llo_original>
